<compile_context>
chip_gen: v7x
topology: tpu7x:2x2x1
jax: 0.10.0
libtpu: 0.0.40
codegen_flags: <defaults>
</compile_context>

<pallas_src>
import jax
import jax.numpy as jnp
from jax.experimental import pallas as pl
from jax.experimental.pallas import tpu as pltpu


# --------------------------------------------------------------------------- #
# Kernel
# --------------------------------------------------------------------------- #
def adapter_kernel(x_ref, wd_ref, bd_ref, wu_ref, bu_ref, o_ref):
    # x_ref:  (TM, D)   batch tile (native dtype, streamed)
    # wd_ref: (D, Hp)   down-projection weight (transposed, H zero-padded)
    # bd_ref: (1, Hp)   down-projection bias (f32, zero-padded)
    # wu_ref: (Hp, D)   up-projection weight (transposed, zero-padded rows)
    # bu_ref: (1, D)    up-projection bias (f32)
    x = x_ref[...]
    h = jnp.dot(x, wd_ref[...], preferred_element_type=jnp.float32) + bd_ref[...]
    h = jnp.maximum(h, 0.0)                                   # ReLU (f32)
    # NOTE: with bf16 weights the hidden activations are down-cast to bf16 for
    # the second MXU pass (slightly looser than a pure-f32 reference).
    y = jnp.dot(h.astype(wu_ref.dtype), wu_ref[...],
                preferred_element_type=jnp.float32) + bu_ref[...]
    # Residual add in f32; the x up-cast is free while the kernel is DMA-bound.
    o_ref[...] = (x.astype(jnp.float32) + y).astype(o_ref.dtype)


# --------------------------------------------------------------------------- #
# Chip-aware budgets
# --------------------------------------------------------------------------- #
def _device_kind():
    try:
        return jax.devices()[0].device_kind.lower()
    except Exception:
        return ""


def _vmem_limit_bytes():
    kind = _device_kind()
    if "v7" in kind:
        return 48 * 1024 * 1024          # v7x: 64 MiB physical per TC
    if "v5" in kind or "v6" in kind:
        return 96 * 1024 * 1024          # v5e/v5p/v6e: 128 MiB physical
    return 48 * 1024 * 1024              # unknown: stay conservative


def _desired_min_steps():
    # >=4 grid steps per core for pipeline overlap; v7x has 2 TCs -> >=8 total.
    return 8 if "v7" in _device_kind() else 4


# --------------------------------------------------------------------------- #
# Tile picking
# --------------------------------------------------------------------------- #
def _pick_tile_rows(B, tm_target, D, Hp, x_itemsize, w_itemsize,
                    vmem_limit, min_steps):
    granule = 8 if x_itemsize >= 4 else (16 if x_itemsize == 2 else 32)

    def round_down(v):
        return max(granule, (v // granule) * granule)

    # Resident weights (single-buffered via pl.Buffered(1)) + f32 biases.
    weight_bytes = 2 * D * Hp * w_itemsize + (Hp + D) * 4
    budget = int(vmem_limit * 0.75) - weight_bytes
    # Per streamed row: x tile + out tile (double-buffered each) + in-kernel
    # f32 temps (hidden (tm, Hp) and the f32 residual/accum (tm, D)).
    bytes_per_row = 4 * D * x_itemsize + (2 * D + Hp) * 4
    cap = round_down(max(granule, budget // bytes_per_row))

    tm = round_down(min(tm_target, cap, max(granule, B)))

    # Prefer >= min_steps grid steps for real prefetch/writeback overlap, but
    # never shrink the tile below 256 rows to get there.
    while pl.cdiv(B, tm) < min_steps and tm >= 512:
        tm = round_down(tm // 2)

    # Small-B fallback: at least 2 grid steps whenever B allows it.
    if pl.cdiv(B, tm) < 2 and B > granule:
        tm = round_down(pl.cdiv(B, 2))

    return tm


# --------------------------------------------------------------------------- #
# One-time parameter preparation (hoisted out of the forward pass)
# --------------------------------------------------------------------------- #
def prepare_adapter_params(w_down, b_down, w_up, b_up):
    """Transpose to [in, out] and zero-pad the hidden dim to a multiple of 128.
    Padded hidden units see zero weights + zero bias -> relu(0) = 0 -> they
    contribute nothing through the (zero-padded) up projection."""
    H, D = w_down.shape
    assert w_up.shape == (D, H) and b_down.shape == (H,) and b_up.shape == (D,)
    Hp = max(128, ((H + 127) // 128) * 128)
    wd_t = jnp.zeros((D, Hp), dtype=w_down.dtype).at[:, :H].set(w_down.T)
    bd = jnp.zeros((1, Hp), dtype=jnp.float32).at[:, :H].set(
        b_down.astype(jnp.float32))
    wu_t = jnp.zeros((Hp, D), dtype=w_up.dtype).at[:H, :].set(w_up.T)
    bu = b_up.astype(jnp.float32).reshape(1, D)
    return wd_t, bd, wu_t, bu


# --------------------------------------------------------------------------- #
# Forward pass
# --------------------------------------------------------------------------- #
def residual_adapter(x, wd_t, bd, wu_t, bu, *, tm=512):
    """x: [B, D]; prepared params from prepare_adapter_params.
    Returns x + up(relu(down(x)))."""
    B, D = x.shape
    Hp = wd_t.shape[1]
    assert wd_t.shape == (D, Hp) and wu_t.shape == (Hp, D)
    assert bd.shape == (1, Hp) and bu.shape == (1, D)

    vmem_limit = _vmem_limit_bytes()
    tm = _pick_tile_rows(B, tm, D, Hp, x.dtype.itemsize, wd_t.dtype.itemsize,
                         vmem_limit, _desired_min_steps())

    # Arbitrary B: pad the last tile with zero rows and slice them off after.
    grid_rows = pl.cdiv(B, tm)
    Bp = grid_rows * tm
    x_in = x if Bp == B else jnp.pad(x, ((0, Bp - B), (0, 0)))

    itemsize = x.dtype.itemsize
    cost = pl.CostEstimate(
        flops=4 * Bp * D * Hp,
        transcendentals=0,
        bytes_accessed=(2 * Bp * D * itemsize
                        + (wd_t.size + wu_t.size) * wd_t.dtype.itemsize
                        + (bd.size + bu.size) * 4),
    )

    # Resident operands: constant index_map + single VMEM buffer (no re-fetch).
    def resident(shape):
        return pl.BlockSpec(shape, lambda i: (0, 0),
                            pipeline_mode=pl.Buffered(1))

    out = pl.pallas_call(
        adapter_kernel,
        out_shape=jax.ShapeDtypeStruct((Bp, D), x.dtype),
        grid_spec=pltpu.PrefetchScalarGridSpec(
            num_scalar_prefetch=0,
            grid=(grid_rows,),
            in_specs=[
                pl.BlockSpec((tm, D), lambda i: (i, 0)),   # x tile (streamed)
                resident((D, Hp)),                         # W_down^T (resident)
                resident((1, Hp)),                         # b_down (f32)
                resident((Hp, D)),                         # W_up^T (resident)
                resident((1, D)),                          # b_up (f32)
            ],
            out_specs=pl.BlockSpec((tm, D), lambda i: (i, 0)),
        ),
        # On v7x, verify with a profile that the batch axis shards across both
        # TensorCores; if not, switch to pltpu.CORE_PARALLEL.
        compiler_params=pltpu.CompilerParams(
            dimension_semantics=("parallel",),
            vmem_limit_bytes=vmem_limit,
        ),
        cost_estimate=cost,
    )(x_in, wd_t, bd, wu_t, bu)

    return out if Bp == B else out[:B]


def residual_adapter_from_linear(x, w_down, b_down, w_up, b_up, *, tm=512):
    """Convenience wrapper taking raw nn.Linear-layout params (prep not hoisted;
    prefer prepare_adapter_params + residual_adapter in a real training loop)."""
    return residual_adapter(x, *prepare_adapter_params(w_down, b_down, w_up, b_up),
                            tm=tm)


# --------------------------------------------------------------------------- #
# Self-test
# --------------------------------------------------------------------------- #
if __name__ == "__main__":
    # Module defaults: dim=512, h_dim=64. Batch chosen so tiling kicks in
    # (tm=128, grid=2) while the problem stays small.
    B, DIM, H_DIM = 256, 512, 64
    key = jax.random.PRNGKey(0)
    kx, kwd, kbd, kwu, kbu = jax.random.split(key, 5)

    x = jax.random.normal(kx, (B, DIM), dtype=jnp.float32)

    # nn.Linear-shaped parameters. The module zero-inits the up projection; use
    # nonzero values here so the numerical check exercises both matmuls, then
    # also verify the actual zero-init (identity) case below.
    bound_d = 1.0 / (DIM ** 0.5)
    bound_u = 1.0 / (H_DIM ** 0.5)
    w_down = jax.random.uniform(kwd, (H_DIM, DIM), minval=-bound_d,
                                maxval=bound_d, dtype=jnp.float32)
    b_down = jax.random.uniform(kbd, (H_DIM,), minval=-bound_d,
                                maxval=bound_d, dtype=jnp.float32)
    w_up = jax.random.uniform(kwu, (DIM, H_DIM), minval=-bound_u,
                              maxval=bound_u, dtype=jnp.float32)
    b_up = jax.random.uniform(kbu, (DIM,), minval=-bound_u,
                              maxval=bound_u, dtype=jnp.float32)

    # One-time parameter preparation (hoisted out of the forward pass).
    params = prepare_adapter_params(w_down, b_down, w_up, b_up)

    out = jax.block_until_ready(residual_adapter(x, *params))

    # Reference in plain JAX at highest matmul precision (PyTorch semantics).
    def ref_fn(xx):
        hid = jnp.maximum(
            jnp.dot(xx, w_down.T, precision=jax.lax.Precision.HIGHEST) + b_down,
            0.0)
        return xx + jnp.dot(hid, w_up.T,
                            precision=jax.lax.Precision.HIGHEST) + b_up

    ref = ref_fn(x)
    assert out.shape == ref.shape and out.dtype == ref.dtype
    assert jnp.allclose(out, ref, atol=2e-3, rtol=2e-3), "mismatch vs reference"

    # Non-divisible batch exercises the cdiv + padded-last-tile path.
    x_odd = x[:200]
    out_odd = jax.block_until_ready(residual_adapter(x_odd, *params))
    assert out_odd.shape == (200, DIM)
    assert jnp.allclose(out_odd, ref_fn(x_odd), atol=2e-3, rtol=2e-3), \
        "mismatch vs reference (padded last tile)"

    # Module's actual __init__ (zeroed up projection) => forward is identity.
    params0 = prepare_adapter_params(
        w_down, b_down,
        jnp.zeros((DIM, H_DIM), jnp.float32), jnp.zeros((DIM,), jnp.float32))
    out0 = jax.block_until_ready(residual_adapter(x, *params0))
    assert jnp.allclose(out0, x), "zero-init adapter should be the identity"

    print("KERNEL_OK")
</pallas_src>

<mosaic_0001>
module attributes {stable_mosaic.version = 11 : i64} {
  func.func @adapter_kernel(%arg0: i32, %arg1: memref<128x512xf32, #tpu.memory_space<vmem>>, %arg2: memref<512x128xf32, #tpu.memory_space<vmem>>, %arg3: memref<1x128xf32, #tpu.memory_space<vmem>>, %arg4: memref<128x512xf32, #tpu.memory_space<vmem>>, %arg5: memref<1x512xf32, #tpu.memory_space<vmem>>, %arg6: memref<128x512xf32, #tpu.memory_space<vmem>>) attributes {dimension_semantics = [#tpu.dimension_semantics<parallel>], iteration_bounds = array<i64: 2>, scalar_prefetch = 0 : i64, scratch_operands = 0 : i64, tpu.core_type = #tpu.core_type<tc>, window_params = [{transform_indices = @transform_0, window_bounds = array<i64: 128, 512>}, {pipeline_mode = #tpu.pipeline_mode<synchronous>, transform_indices = @transform_1, window_bounds = array<i64: 512, 128>}, {pipeline_mode = #tpu.pipeline_mode<synchronous>, transform_indices = @transform_2, window_bounds = array<i64: 1, 128>}, {pipeline_mode = #tpu.pipeline_mode<synchronous>, transform_indices = @transform_3, window_bounds = array<i64: 128, 512>}, {pipeline_mode = #tpu.pipeline_mode<synchronous>, transform_indices = @transform_4, window_bounds = array<i64: 1, 512>}, {transform_indices = @transform_5, window_bounds = array<i64: 128, 512>}]} {
    %c0 = arith.constant 0 : index
    %c0_0 = arith.constant 0 : index
    %0 = vector.load %arg1[%c0, %c0_0] : memref<128x512xf32, #tpu.memory_space<vmem>>, vector<128x512xf32>
    %c0_1 = arith.constant 0 : index
    %c0_2 = arith.constant 0 : index
    %1 = vector.load %arg2[%c0_1, %c0_2] : memref<512x128xf32, #tpu.memory_space<vmem>>, vector<512x128xf32>
    %cst = arith.constant dense<0.000000e+00> : vector<128x128xf32>
    %2 = tpu.matmul %0, %1, %cst {dimension_numbers = #tpu.dot_dimension_numbers<[1], [0], [0], [1], [0, 0, 1, 1], [], []>} : vector<128x512xf32>, vector<512x128xf32>, vector<128x128xf32> -> vector<128x128xf32>
    %c0_3 = arith.constant 0 : index
    %c0_4 = arith.constant 0 : index
    %3 = vector.load %arg3[%c0_3, %c0_4] : memref<1x128xf32, #tpu.memory_space<vmem>>, vector<1x128xf32>
    %4 = vector.broadcast %3 : vector<1x128xf32> to vector<128x128xf32>
    %5 = arith.addf %2, %4 : vector<128x128xf32>
    %cst_5 = arith.constant 0.000000e+00 : f32
    %6 = vector.broadcast %cst_5 : f32 to vector<128x128xf32>
    %7 = arith.maximumf %5, %6 : vector<128x128xf32>
    %c0_6 = arith.constant 0 : index
    %c0_7 = arith.constant 0 : index
    %8 = vector.load %arg4[%c0_6, %c0_7] : memref<128x512xf32, #tpu.memory_space<vmem>>, vector<128x512xf32>
    %cst_8 = arith.constant dense<0.000000e+00> : vector<128x512xf32>
    %9 = tpu.matmul %7, %8, %cst_8 {dimension_numbers = #tpu.dot_dimension_numbers<[1], [0], [0], [1], [0, 0, 1, 1], [], []>} : vector<128x128xf32>, vector<128x512xf32>, vector<128x512xf32> -> vector<128x512xf32>
    %c0_9 = arith.constant 0 : index
    %c0_10 = arith.constant 0 : index
    %10 = vector.load %arg5[%c0_9, %c0_10] : memref<1x512xf32, #tpu.memory_space<vmem>>, vector<1x512xf32>
    %11 = vector.broadcast %10 : vector<1x512xf32> to vector<128x512xf32>
    %12 = arith.addf %9, %11 : vector<128x512xf32>
    %13 = arith.addf %0, %12 : vector<128x512xf32>
    %c0_11 = arith.constant 0 : index
    %c0_12 = arith.constant 0 : index
    %14 = vector.load %arg6[%c0_11, %c0_12] : memref<128x512xf32, #tpu.memory_space<vmem>>, vector<128x512xf32>
    tpu.vector_store %arg6[%c0_11, %c0_12], %13 {strides = array<i32>} : memref<128x512xf32, #tpu.memory_space<vmem>>, vector<128x512xf32>,
    return
  }
  func.func @transform_0(%arg0: i32) -> (i32, i32) {
    %c0_i32 = arith.constant 0 : i32
    %c0_i32_0 = arith.constant 0 : i32
    return %arg0, %c0_i32 : i32, i32
  }
  func.func @transform_1(%arg0: i32) -> (i32, i32) {
    %c0_i32 = arith.constant 0 : i32
    %c0_i32_0 = arith.constant 0 : i32
    %c0_i32_1 = arith.constant 0 : i32
    return %c0_i32, %c0_i32_0 : i32, i32
  }
  func.func @transform_2(%arg0: i32) -> (i32, i32) {
    %c0_i32 = arith.constant 0 : i32
    %c0_i32_0 = arith.constant 0 : i32
    %c0_i32_1 = arith.constant 0 : i32
    return %c0_i32, %c0_i32_0 : i32, i32
  }
  func.func @transform_3(%arg0: i32) -> (i32, i32) {
    %c0_i32 = arith.constant 0 : i32
    %c0_i32_0 = arith.constant 0 : i32
    %c0_i32_1 = arith.constant 0 : i32
    return %c0_i32, %c0_i32_0 : i32, i32
  }
  func.func @transform_4(%arg0: i32) -> (i32, i32) {
    %c0_i32 = arith.constant 0 : i32
    %c0_i32_0 = arith.constant 0 : i32
    %c0_i32_1 = arith.constant 0 : i32
    return %c0_i32, %c0_i32_0 : i32, i32
  }
  func.func @transform_5(%arg0: i32) -> (i32, i32) {
    %c0_i32 = arith.constant 0 : i32
    %c0_i32_0 = arith.constant 0 : i32
    return %arg0, %c0_i32 : i32, i32
  }
}

</mosaic_0001>

<llo_original>
// kernel: tpu_custom_call.1
$region0: #{tpu_custom_call.1}
  #allocation0 [shape = 'u32[]', space=smem, size = 0x4, offset = 0x4, fixed_abs, tag = 'smem constant byte address 0x4 - core index']
  #allocation1 [shape = 'u32[144,128]{1,0:T(1,128)}', space=vmem, size = 0x12000, scoped, tag = 'internal scratch']
  %s0 = inlined_call_operand.hbm [shape: f32[256,512], index: 0, kind: input, shape index: {}]
  %s1 = inlined_call_operand.hbm [shape: f32[512,128], index: 1, kind: input, shape index: {}]
  %s2 = inlined_call_operand.vmem [shape: f32[1,128], index: 2, kind: input, shape index: {}]
  %s3 = inlined_call_operand.hbm [shape: f32[128,512], index: 3, kind: input, shape index: {}]
  %s4 = inlined_call_operand.vmem [shape: f32[1,512], index: 4, kind: input, shape index: {}]
  %s5 = inlined_call_operand.hbm [shape: f32[256,512], index: 5, kind: output, shape index: {}]
  %s6 = sld [smem:[#allocation0]]
  $region65: #{tpu_custom_call.1} parent=0
    _
  %s8 = ssub.s32 1, %s6
  %s9 = scalar_select 0, %s8, %s6
  $region1: #{tpu_custom_call.1} parent=0
    #allocation2 [shape = 'u8[524288]{0}', space=vmem, size = 0x80000, scoped, tag = 'input window, operand 0']
    #allocation3 [shape = 's32[2]{0}', space=sflag, size = 0x8, scoped, tag = 'scoped memory for tpu_custom_call.1']
    #allocation4 [shape = 's32[2]{0}', space=sflag, size = 0x8, scoped, tag = 'scoped memory for tpu_custom_call.1']
    #allocation5 [shape = 'u8[262144]{0}', space=vmem, size = 0x40000, scoped, tag = 'input window, operand 1, single buffered']
    #allocation6 [shape = 's32[1]{0}', space=sflag, size = 0x4, scoped, tag = 'scoped memory for tpu_custom_call.1']
    #allocation7 [shape = 'u8[262144]{0}', space=vmem, size = 0x40000, scoped, tag = 'input window, operand 3, single buffered']
    #allocation8 [shape = 'u8[524288]{0}', space=vmem, size = 0x80000, scoped, tag = 'output window, operand 0']
    %10 = vsyncpa [#allocation3], 0
    %s11 = scalar_lea.sflag [#allocation3], 1
    %12 = vsyncpa %s11, 0
    %13 = vsyncpa [#allocation6], 0
    %14 = vsyncpa [#allocation4], 0
    %s15 = scalar_lea.sflag [#allocation4], 1
    %16 = vsyncpa %s15, 0
    loop: start=0, step=1, limit=4
    $region2: #{tpu_custom_call.1} parent=1 // loop_pre_header
      _
    $region3: #{tpu_custom_call.1} parent=1 // loop_header
      %s18 = sphi 0, %s22
      %p19 = scmp.ge.s32.totalorder %s18, 4
      %s28 = sphi 0, %s30
      %s31 = sphi 0, %s28
      %s32 = sphi 0, %s31
      %s48 = sphi 0, %s32
      %s52 = sphi 0, %s52
      %s54 = sphi 0, %s52
      %s55 = sphi 0, %s54
      %s69 = sphi 0, %s55
      %s73 = sphi 0, %s73
      %s75 = sphi 0, %s73
      %s76 = sphi 0, %s75
      %s90 = sphi 0, %s76
      %s94 = sphi 0, %s94
      %s96 = sphi 0, %s94
      %s97 = sphi 0, %s96
      %s111 = sphi 0, %s97
      %s115 = sphi 0, %s115
      %s117 = sphi 0, %s115
      %s118 = sphi 0, %s117
      %s132 = sphi 0, %s118
      %s138 = sphi 0, %s140
      %s141 = sphi 0, %s138
      %s142 = sphi 0, %s141
      %s158 = sphi 0, %s142
    $region4: #{tpu_custom_call.1} parent=1 // loop_header_branch
      %21 = sbr.rel (%p19) target = $region8
    $region5: #{tpu_custom_call.1} parent=1 // loop_body
      %s23 = ssub.s32 %s18, 1
      %s24 = ssub.s32 %s18, 2
      %s25 = sadd.s32 %s18, 1
      %s26 = ssub.s32 %s18, %s25
      %p27 = scmp.eq.s32.totalorder %s26, 0
      %s29 = sadd.s32 %s28, 1
      %s30 = scalar_select %p27, %s28, %s29
      %p33 = pneg %p27
      %p34 = scmp.eq.s32.totalorder %s18, 1
      %p35 = por %p33, %p34
      %p36 = scmp.ne.s32.totalorder %s28, %s31
      %p37 = scmp.eq.s32.totalorder %s18, 0
      %p38 = por %p36, %p37
      %p39 = scmp.ne.s32.totalorder %s28, %s31
      %p40 = scmp.eq.s32.totalorder %s23, 1
      %p41 = por %p39, %p40
      %p42 = scmp.ne.s32.totalorder %s31, %s32
      %p43 = scmp.eq.s32.totalorder %s23, 0
      %p44 = por %p42, %p43
      %p45 = scmp.ne.s32.totalorder %s31, %s32
      %p46 = scmp.eq.s32.totalorder %s24, 1
      %p47 = por %p45, %p46
      %p49 = scmp.ne.s32.totalorder %s32, %s48
      %p50 = scmp.eq.s32.totalorder %s24, 0
      %p51 = por %p49, %p50
      %s53 = sadd.s32 %s52, 1
      %p56 = scmp.eq.s32.totalorder %s18, 1
      %p57 = scmp.ne.s32.totalorder %s52, %s54
      %p58 = scmp.eq.s32.totalorder %s18, 0
      %p59 = por %p57, %p58
      %p60 = scmp.ne.s32.totalorder %s52, %s54
      %p61 = scmp.eq.s32.totalorder %s23, 1
      %p62 = por %p60, %p61
      %p63 = scmp.ne.s32.totalorder %s54, %s55
      %p64 = scmp.eq.s32.totalorder %s23, 0
      %p65 = por %p63, %p64
      %p66 = scmp.ne.s32.totalorder %s54, %s55
      %p67 = scmp.eq.s32.totalorder %s24, 1
      %p68 = por %p66, %p67
      %p70 = scmp.ne.s32.totalorder %s55, %s69
      %p71 = scmp.eq.s32.totalorder %s24, 0
      %p72 = por %p70, %p71
      %s74 = sadd.s32 %s73, 1
      %p77 = scmp.eq.s32.totalorder %s18, 1
      %p78 = scmp.ne.s32.totalorder %s73, %s75
      %p79 = scmp.eq.s32.totalorder %s18, 0
      %p80 = por %p78, %p79
      %p81 = scmp.ne.s32.totalorder %s73, %s75
      %p82 = scmp.eq.s32.totalorder %s23, 1
      %p83 = por %p81, %p82
      %p84 = scmp.ne.s32.totalorder %s75, %s76
      %p85 = scmp.eq.s32.totalorder %s23, 0
      %p86 = por %p84, %p85
      %p87 = scmp.ne.s32.totalorder %s75, %s76
      %p88 = scmp.eq.s32.totalorder %s24, 1
      %p89 = por %p87, %p88
      %p91 = scmp.ne.s32.totalorder %s76, %s90
      %p92 = scmp.eq.s32.totalorder %s24, 0
      %p93 = por %p91, %p92
      %s95 = sadd.s32 %s94, 1
      %p98 = scmp.eq.s32.totalorder %s18, 1
      %p99 = scmp.ne.s32.totalorder %s94, %s96
      %p100 = scmp.eq.s32.totalorder %s18, 0
      %p101 = por %p99, %p100
      %p102 = scmp.ne.s32.totalorder %s94, %s96
      %p103 = scmp.eq.s32.totalorder %s23, 1
      %p104 = por %p102, %p103
      %p105 = scmp.ne.s32.totalorder %s96, %s97
      %p106 = scmp.eq.s32.totalorder %s23, 0
      %p107 = por %p105, %p106
      %p108 = scmp.ne.s32.totalorder %s96, %s97
      %p109 = scmp.eq.s32.totalorder %s24, 1
      %p110 = por %p108, %p109
      %p112 = scmp.ne.s32.totalorder %s97, %s111
      %p113 = scmp.eq.s32.totalorder %s24, 0
      %p114 = por %p112, %p113
      %s116 = sadd.s32 %s115, 1
      %p119 = scmp.eq.s32.totalorder %s18, 1
      %p120 = scmp.ne.s32.totalorder %s115, %s117
      %p121 = scmp.eq.s32.totalorder %s18, 0
      %p122 = por %p120, %p121
      %p123 = scmp.ne.s32.totalorder %s115, %s117
      %p124 = scmp.eq.s32.totalorder %s23, 1
      %p125 = por %p123, %p124
      %p126 = scmp.ne.s32.totalorder %s117, %s118
      %p127 = scmp.eq.s32.totalorder %s23, 0
      %p128 = por %p126, %p127
      %p129 = scmp.ne.s32.totalorder %s117, %s118
      %p130 = scmp.eq.s32.totalorder %s24, 1
      %p131 = por %p129, %p130
      %p133 = scmp.ne.s32.totalorder %s118, %s132
      %p134 = scmp.eq.s32.totalorder %s24, 0
      %p135 = por %p133, %p134
      %s136 = ssub.s32 %s18, %s25
      %p137 = scmp.eq.s32.totalorder %s136, 0
      %s139 = sadd.s32 %s138, 1
      %s140 = scalar_select %p137, %s138, %s139
      %p143 = pneg %p137
      %p144 = scmp.eq.s32.totalorder %s18, 1
      %p145 = por %p143, %p144
      %p146 = scmp.ne.s32.totalorder %s138, %s141
      %p147 = scmp.eq.s32.totalorder %s18, 0
      %p148 = por %p146, %p147
      %p149 = scmp.ne.s32.totalorder %s138, %s141
      %p150 = scmp.eq.s32.totalorder %s23, 1
      %p151 = por %p149, %p150
      %p152 = scmp.ne.s32.totalorder %s141, %s142
      %p153 = scmp.eq.s32.totalorder %s23, 0
      %p154 = por %p152, %p153
      %p155 = scmp.ne.s32.totalorder %s141, %s142
      %p156 = scmp.eq.s32.totalorder %s24, 1
      %p157 = por %p155, %p156
      %p159 = scmp.ne.s32.totalorder %s142, %s158
      %p160 = scmp.eq.s32.totalorder %s24, 0
      %p161 = por %p159, %p160
      %p162 = scmp.le.s32.totalorder 1, %s18
      %p163 = scmp.lt.s32.totalorder %s18, 3
      %p164 = pnand %p162, %p163
      %p165 = pneg %p164
      // Predicated region
      $region9: #{tpu_custom_call.1} parent=5 // pred_check
        _
      $region10: #{tpu_custom_call.1} parent=5 // pred_check_branch
        %167 = sbr.rel (%p164) target = $region12
      $region11: #{tpu_custom_call.1} parent=5 // pred_region
        %s168 = ssub.s32 %s18, 1
        // Predicated region
        $region13: #{tpu_custom_call.1} parent=11 // pred_check
          %p169 = pneg %p65
        $region14: #{tpu_custom_call.1} parent=11 // pred_check_branch
          %171 = sbr.rel (%p169) target = $region16
        $region15: #{tpu_custom_call.1} parent=11 // pred_region
          %s173 = ssub.s32 8192, 8192
          %174 = vsyncadd [#allocation6], %s173
          %s175 = sshll.u32 [#allocation5], 4
          %s176 = int_to_ptr.vmem [resolvable:$true] %s175
          %181 = dma.hbm_to_vmem [thread:$0]  %s1, 8192, %s176, [#allocation6], 128, 128, 8
        $region16: #{tpu_custom_call.1} parent=11 // pred_fallthru
          _
        // Predicated region
        $region17: #{tpu_custom_call.1} parent=11 // pred_check
          %p182 = pneg %p86
        $region18: #{tpu_custom_call.1} parent=11 // pred_check_branch
          %184 = sbr.rel (%p182) target = $region20
        $region19: #{tpu_custom_call.1} parent=11 // pred_region
          _
        $region20: #{tpu_custom_call.1} parent=11 // pred_fallthru
          _
        // Predicated region
        $region21: #{tpu_custom_call.1} parent=11 // pred_check
          %p185 = pneg %p107
        $region22: #{tpu_custom_call.1} parent=11 // pred_check_branch
          %187 = sbr.rel (%p185) target = $region24
        $region23: #{tpu_custom_call.1} parent=11 // pred_region
          %s189 = ssub.s32 8192, 8192
          %190 = vsyncadd [#allocation6], %s189
          %s191 = sshll.u32 [#allocation7], 4
          %s192 = int_to_ptr.vmem [resolvable:$true] %s191
          %197 = dma.hbm_to_vmem [thread:$0]  %s3, 8192, %s192, [#allocation6], 512, 512, 32
        $region24: #{tpu_custom_call.1} parent=11 // pred_fallthru
          _
        // Predicated region
        $region25: #{tpu_custom_call.1} parent=11 // pred_check
          %p198 = pneg %p128
        $region26: #{tpu_custom_call.1} parent=11 // pred_check_branch
          %200 = sbr.rel (%p198) target = $region28
        $region27: #{tpu_custom_call.1} parent=11 // pred_region
          _
        $region28: #{tpu_custom_call.1} parent=11 // pred_fallthru
          _
      $region12: #{tpu_custom_call.1} parent=5 // pred_fallthru
        _
      %p201 = scmp.lt.s32.totalorder %s18, 2
      // Predicated region
      $region29: #{tpu_custom_call.1} parent=5 // pred_check
        %p202 = pneg %p201
      $region30: #{tpu_custom_call.1} parent=5 // pred_check_branch
        %204 = sbr.rel (%p202) target = $region32
      $region31: #{tpu_custom_call.1} parent=5 // pred_region
        // Predicated region
        $region33: #{tpu_custom_call.1} parent=31 // pred_check
          %p205 = pneg %p38
        $region34: #{tpu_custom_call.1} parent=31 // pred_check_branch
          %207 = sbr.rel (%p205) target = $region36
        $region35: #{tpu_custom_call.1} parent=31 // pred_region
          %s208 = sand.u32 %s28, 1
          %s209 = scalar_lea.sflag [#allocation3], %s208
          %s210 = sand.u32 %s28, 1
          %s211 = smul.addr %s210, 512
          %s212 = scalar_lea.vmem [#allocation2], %s211
          %s213 = smul.u32 16, %s18
          %s215 = ssub.s32 8192, 8192
          %216 = vsyncadd %s209, %s215
          %s217 = smul.addr %s213, 4
          %s218 = smul.addr %s217, 128
          %s219 = scalar_lea.hbm %s0, %s218
          %s220 = sshll.u32 %s212, 4
          %s221 = int_to_ptr.vmem [resolvable:$true] %s220
          %226 = dma.hbm_to_vmem [thread:$0]  %s219, 8192, %s221, %s209, 512, 512, 32
        $region36: #{tpu_custom_call.1} parent=31 // pred_fallthru
          _
      $region32: #{tpu_custom_call.1} parent=5 // pred_fallthru
        _
      %p227 = scmp.le.s32.totalorder 1, %s18
      %p228 = scmp.lt.s32.totalorder %s18, 3
      %p229 = pnand %p227, %p228
      %p230 = pneg %p229
      // Predicated region
      $region37: #{tpu_custom_call.1} parent=5 // pred_check
        _
      $region38: #{tpu_custom_call.1} parent=5 // pred_check_branch
        %232 = sbr.rel (%p229) target = $region40
      $region39: #{tpu_custom_call.1} parent=5 // pred_region
        %s233 = ssub.s32 %s18, 1
        %s234 = sand.u32 %s31, 1
        %s235 = scalar_lea.sflag [#allocation3], %s234
        %s236 = sand.u32 %s31, 1
        %s237 = smul.addr %s236, 512
        %s238 = scalar_lea.vmem [#allocation2], %s237
        // Predicated region
        $region41: #{tpu_custom_call.1} parent=39 // pred_check
          %p239 = pneg %p44
        $region42: #{tpu_custom_call.1} parent=39 // pred_check_branch
          %241 = sbr.rel (%p239) target = $region44
        $region43: #{tpu_custom_call.1} parent=39 // pred_region
          %242 = dma.done %s235, 8192
        $region44: #{tpu_custom_call.1} parent=39 // pred_fallthru
          _
        // Predicated region
        $region45: #{tpu_custom_call.1} parent=39 // pred_check
          %p243 = pneg %p65
        $region46: #{tpu_custom_call.1} parent=39 // pred_check_branch
          %245 = sbr.rel (%p243) target = $region48
        $region47: #{tpu_custom_call.1} parent=39 // pred_region
          %246 = dma.done [#allocation6], 8192
        $region48: #{tpu_custom_call.1} parent=39 // pred_fallthru
          _
        // Predicated region
        $region49: #{tpu_custom_call.1} parent=39 // pred_check
          %p247 = pneg %p107
        $region50: #{tpu_custom_call.1} parent=39 // pred_check_branch
          %249 = sbr.rel (%p247) target = $region52
        $region51: #{tpu_custom_call.1} parent=39 // pred_region
          %250 = dma.done [#allocation6], 8192
        $region52: #{tpu_custom_call.1} parent=39 // pred_fallthru
          _
        %s251 = sand.u32 %s31, 1
        %s252 = scalar_lea.sflag [#allocation3], %s251
        %s253 = sand.u32 %s31, 1
        %s254 = smul.addr %s253, 512
        %s255 = scalar_lea.vmem [#allocation2], %s254
        %p256 = pneg %p44
        %p257 = pneg %p41
        %p258 = pneg %p65
        %p259 = pneg %p62
        %p260 = pneg %p86
        %p261 = pneg %p83
        %p262 = pneg %p107
        %p263 = pneg %p104
        %p264 = pneg %p128
        %p265 = pneg %p125
        %p266 = pneg %p154
        %p267 = pneg %p151
        %s268 = sand.u32 %s141, 1
        %s269 = scalar_lea.sflag [#allocation4], %s268
        %s270 = sand.u32 %s141, 1
        %s271 = smul.addr %s270, 512
        %s272 = scalar_lea.vmem [#allocation8], %s271
        %s273 = smul.u32 16, %s23
        %s274 = smul.u32 16, %s23
        %v275 = vld [vmem:[%s238] sm:$0xff]
        %v276 = vld [vmem:[%s238 + $0x8] sm:$0xff]
        %v277 = vld [vmem:[%s238 + $0x10] sm:$0xff]
        %v278 = vld [vmem:[%s238 + $0x18] sm:$0xff]
        %v279 = vld [vmem:[%s238 + $0x20] sm:$0xff]
        %v280 = vld [vmem:[%s238 + $0x28] sm:$0xff]
        %v281 = vld [vmem:[%s238 + $0x30] sm:$0xff]
        %v282 = vld [vmem:[%s238 + $0x38] sm:$0xff]
        %v283 = vld [vmem:[%s238 + $0x40] sm:$0xff]
        %v284 = vld [vmem:[%s238 + $0x48] sm:$0xff]
        %v285 = vld [vmem:[%s238 + $0x50] sm:$0xff]
        %v286 = vld [vmem:[%s238 + $0x58] sm:$0xff]
        %v287 = vld [vmem:[%s238 + $0x60] sm:$0xff]
        %v288 = vld [vmem:[%s238 + $0x68] sm:$0xff]
        %v289 = vld [vmem:[%s238 + $0x70] sm:$0xff]
        %v290 = vld [vmem:[%s238 + $0x78] sm:$0xff]
        %v291 = vld [vmem:[%s238 + $0x80] sm:$0xff]
        %v292 = vld [vmem:[%s238 + $0x88] sm:$0xff]
        %v293 = vld [vmem:[%s238 + $0x90] sm:$0xff]
        %v294 = vld [vmem:[%s238 + $0x98] sm:$0xff]
        %v295 = vld [vmem:[%s238 + $0xa0] sm:$0xff]
        %v296 = vld [vmem:[%s238 + $0xa8] sm:$0xff]
        %v297 = vld [vmem:[%s238 + $0xb0] sm:$0xff]
        %v298 = vld [vmem:[%s238 + $0xb8] sm:$0xff]
        %v299 = vld [vmem:[%s238 + $0xc0] sm:$0xff]
        %v300 = vld [vmem:[%s238 + $0xc8] sm:$0xff]
        %v301 = vld [vmem:[%s238 + $0xd0] sm:$0xff]
        %v302 = vld [vmem:[%s238 + $0xd8] sm:$0xff]
        %v303 = vld [vmem:[%s238 + $0xe0] sm:$0xff]
        %v304 = vld [vmem:[%s238 + $0xe8] sm:$0xff]
        %v305 = vld [vmem:[%s238 + $0xf0] sm:$0xff]
        %v306 = vld [vmem:[%s238 + $0xf8] sm:$0xff]
        %v307 = vld [vmem:[%s238 + $0x100] sm:$0xff]
        %v308 = vld [vmem:[%s238 + $0x108] sm:$0xff]
        %v309 = vld [vmem:[%s238 + $0x110] sm:$0xff]
        %v310 = vld [vmem:[%s238 + $0x118] sm:$0xff]
        %v311 = vld [vmem:[%s238 + $0x120] sm:$0xff]
        %v312 = vld [vmem:[%s238 + $0x128] sm:$0xff]
        %v313 = vld [vmem:[%s238 + $0x130] sm:$0xff]
        %v314 = vld [vmem:[%s238 + $0x138] sm:$0xff]
        %v315 = vld [vmem:[%s238 + $0x140] sm:$0xff]
        %v316 = vld [vmem:[%s238 + $0x148] sm:$0xff]
        %v317 = vld [vmem:[%s238 + $0x150] sm:$0xff]
        %v318 = vld [vmem:[%s238 + $0x158] sm:$0xff]
        %v319 = vld [vmem:[%s238 + $0x160] sm:$0xff]
        %v320 = vld [vmem:[%s238 + $0x168] sm:$0xff]
        %v321 = vld [vmem:[%s238 + $0x170] sm:$0xff]
        %v322 = vld [vmem:[%s238 + $0x178] sm:$0xff]
        %v323 = vld [vmem:[%s238 + $0x180] sm:$0xff]
        %v324 = vld [vmem:[%s238 + $0x188] sm:$0xff]
        %v325 = vld [vmem:[%s238 + $0x190] sm:$0xff]
        %v326 = vld [vmem:[%s238 + $0x198] sm:$0xff]
        %v327 = vld [vmem:[%s238 + $0x1a0] sm:$0xff]
        %v328 = vld [vmem:[%s238 + $0x1a8] sm:$0xff]
        %v329 = vld [vmem:[%s238 + $0x1b0] sm:$0xff]
        %v330 = vld [vmem:[%s238 + $0x1b8] sm:$0xff]
        %v331 = vld [vmem:[%s238 + $0x1c0] sm:$0xff]
        %v332 = vld [vmem:[%s238 + $0x1c8] sm:$0xff]
        %v333 = vld [vmem:[%s238 + $0x1d0] sm:$0xff]
        %v334 = vld [vmem:[%s238 + $0x1d8] sm:$0xff]
        %v335 = vld [vmem:[%s238 + $0x1e0] sm:$0xff]
        %v336 = vld [vmem:[%s238 + $0x1e8] sm:$0xff]
        %v337 = vld [vmem:[%s238 + $0x1f0] sm:$0xff]
        %v338 = vld [vmem:[%s238 + $0x1f8] sm:$0xff]
        %v339 = vld [vmem:[#allocation5] sm:$0xff]
        %v340 = vld [vmem:[#allocation5 + $0x8] sm:$0xff]
        %v341 = vld [vmem:[#allocation5 + $0x10] sm:$0xff]
        %v342 = vld [vmem:[#allocation5 + $0x18] sm:$0xff]
        %v343 = vld [vmem:[#allocation5 + $0x20] sm:$0xff]
        %v344 = vld [vmem:[#allocation5 + $0x28] sm:$0xff]
        %v345 = vld [vmem:[#allocation5 + $0x30] sm:$0xff]
        %v346 = vld [vmem:[#allocation5 + $0x38] sm:$0xff]
        %v347 = vld [vmem:[#allocation5 + $0x40] sm:$0xff]
        %v348 = vld [vmem:[#allocation5 + $0x48] sm:$0xff]
        %v349 = vld [vmem:[#allocation5 + $0x50] sm:$0xff]
        %v350 = vld [vmem:[#allocation5 + $0x58] sm:$0xff]
        %v351 = vld [vmem:[#allocation5 + $0x60] sm:$0xff]
        %v352 = vld [vmem:[#allocation5 + $0x68] sm:$0xff]
        %v353 = vld [vmem:[#allocation5 + $0x70] sm:$0xff]
        %v354 = vld [vmem:[#allocation5 + $0x78] sm:$0xff]
        %v355 = vld [vmem:[#allocation5 + $0x80] sm:$0xff]
        %v356 = vld [vmem:[#allocation5 + $0x88] sm:$0xff]
        %v357 = vld [vmem:[#allocation5 + $0x90] sm:$0xff]
        %v358 = vld [vmem:[#allocation5 + $0x98] sm:$0xff]
        %v359 = vld [vmem:[#allocation5 + $0xa0] sm:$0xff]
        %v360 = vld [vmem:[#allocation5 + $0xa8] sm:$0xff]
        %v361 = vld [vmem:[#allocation5 + $0xb0] sm:$0xff]
        %v362 = vld [vmem:[#allocation5 + $0xb8] sm:$0xff]
        %v363 = vld [vmem:[#allocation5 + $0xc0] sm:$0xff]
        %v364 = vld [vmem:[#allocation5 + $0xc8] sm:$0xff]
        %v365 = vld [vmem:[#allocation5 + $0xd0] sm:$0xff]
        %v366 = vld [vmem:[#allocation5 + $0xd8] sm:$0xff]
        %v367 = vld [vmem:[#allocation5 + $0xe0] sm:$0xff]
        %v368 = vld [vmem:[#allocation5 + $0xe8] sm:$0xff]
        %v369 = vld [vmem:[#allocation5 + $0xf0] sm:$0xff]
        %v370 = vld [vmem:[#allocation5 + $0xf8] sm:$0xff]
        %v371 = vld [vmem:[#allocation5 + $0x100] sm:$0xff]
        %v372 = vld [vmem:[#allocation5 + $0x108] sm:$0xff]
        %v373 = vld [vmem:[#allocation5 + $0x110] sm:$0xff]
        %v374 = vld [vmem:[#allocation5 + $0x118] sm:$0xff]
        %v375 = vld [vmem:[#allocation5 + $0x120] sm:$0xff]
        %v376 = vld [vmem:[#allocation5 + $0x128] sm:$0xff]
        %v377 = vld [vmem:[#allocation5 + $0x130] sm:$0xff]
        %v378 = vld [vmem:[#allocation5 + $0x138] sm:$0xff]
        %v379 = vld [vmem:[#allocation5 + $0x140] sm:$0xff]
        %v380 = vld [vmem:[#allocation5 + $0x148] sm:$0xff]
        %v381 = vld [vmem:[#allocation5 + $0x150] sm:$0xff]
        %v382 = vld [vmem:[#allocation5 + $0x158] sm:$0xff]
        %v383 = vld [vmem:[#allocation5 + $0x160] sm:$0xff]
        %v384 = vld [vmem:[#allocation5 + $0x168] sm:$0xff]
        %v385 = vld [vmem:[#allocation5 + $0x170] sm:$0xff]
        %v386 = vld [vmem:[#allocation5 + $0x178] sm:$0xff]
        %v387 = vld [vmem:[#allocation5 + $0x180] sm:$0xff]
        %v388 = vld [vmem:[#allocation5 + $0x188] sm:$0xff]
        %v389 = vld [vmem:[#allocation5 + $0x190] sm:$0xff]
        %v390 = vld [vmem:[#allocation5 + $0x198] sm:$0xff]
        %v391 = vld [vmem:[#allocation5 + $0x1a0] sm:$0xff]
        %v392 = vld [vmem:[#allocation5 + $0x1a8] sm:$0xff]
        %v393 = vld [vmem:[#allocation5 + $0x1b0] sm:$0xff]
        %v394 = vld [vmem:[#allocation5 + $0x1b8] sm:$0xff]
        %v395 = vld [vmem:[#allocation5 + $0x1c0] sm:$0xff]
        %v396 = vld [vmem:[#allocation5 + $0x1c8] sm:$0xff]
        %v397 = vld [vmem:[#allocation5 + $0x1d0] sm:$0xff]
        %v398 = vld [vmem:[#allocation5 + $0x1d8] sm:$0xff]
        %v399 = vld [vmem:[#allocation5 + $0x1e0] sm:$0xff]
        %v400 = vld [vmem:[#allocation5 + $0x1e8] sm:$0xff]
        %v401 = vld [vmem:[#allocation5 + $0x1f0] sm:$0xff]
        %v402 = vld [vmem:[#allocation5 + $0x1f8] sm:$0xff]
        %v403 = vld [vmem:[%s2] sm:$0x1]
        %v405 = vlaneseq
        %v406 = vshrl.u32 %v405, 7
        %v407 = vsub.s32 0, %v406
        %v408 = vrot.slane %v403, %v407
        %410 = vmatprep.subr.mxu0 0.0
        %411 = vmatpush1.msra.mxu0 %v339
        %412 = vmatprep.subr.mxu0 0.0
        %413 = vmatpush1.msra.mxu0 %v340
        %414 = vmatprep.subr.mxu0 0.0
        %415 = vmatpush1.msra.mxu0 %v341
        %416 = vmatprep.subr.mxu0 0.0
        %417 = vmatpush1.msra.mxu0 %v342
        %418 = vmatprep.subr.mxu0 0.0
        %419 = vmatpush1.msra.mxu0 %v343
        %420 = vmatprep.subr.mxu0 0.0
        %421 = vmatpush1.msra.mxu0 %v344
        %422 = vmatprep.subr.mxu0 0.0
        %423 = vmatpush1.msra.mxu0 %v345
        %424 = vmatprep.subr.mxu0 0.0
        %425 = vmatpush1.msra.mxu0 %v346
        %426 = vmatprep.subr.mxu0 0.0
        %427 = vmatpush1.msra.mxu0 %v347
        %428 = vmatprep.subr.mxu0 0.0
        %429 = vmatpush1.msra.mxu0 %v348
        %430 = vmatprep.subr.mxu0 0.0
        %431 = vmatpush1.msra.mxu0 %v349
        %432 = vmatprep.subr.mxu0 0.0
        %433 = vmatpush1.msra.mxu0 %v350
        %434 = vmatprep.subr.mxu0 0.0
        %435 = vmatpush1.msra.mxu0 %v351
        %436 = vmatprep.subr.mxu0 0.0
        %437 = vmatpush1.msra.mxu0 %v352
        %438 = vmatprep.subr.mxu0 0.0
        %439 = vmatpush1.msra.mxu0 %v353
        %440 = vmatprep.subr.mxu0 0.0
        %441 = vmatpush1.msra.mxu0 %v354
        %442 = vmatprep.subr.mxu0 0.0
        %443 = vmatpush1.msra.mxu0 %v355
        %444 = vmatprep.subr.mxu0 0.0
        %445 = vmatpush1.msra.mxu0 %v356
        %446 = vmatprep.subr.mxu0 0.0
        %447 = vmatpush1.msra.mxu0 %v357
        %448 = vmatprep.subr.mxu0 0.0
        %449 = vmatpush1.msra.mxu0 %v358
        %450 = vmatprep.subr.mxu0 0.0
        %451 = vmatpush1.msra.mxu0 %v359
        %452 = vmatprep.subr.mxu0 0.0
        %453 = vmatpush1.msra.mxu0 %v360
        %454 = vmatprep.subr.mxu0 0.0
        %455 = vmatpush1.msra.mxu0 %v361
        %456 = vmatprep.subr.mxu0 0.0
        %457 = vmatpush1.msra.mxu0 %v362
        %458 = vmatprep.subr.mxu0 0.0
        %459 = vmatpush1.msra.mxu0 %v363
        %460 = vmatprep.subr.mxu0 0.0
        %461 = vmatpush1.msra.mxu0 %v364
        %462 = vmatprep.subr.mxu0 0.0
        %463 = vmatpush1.msra.mxu0 %v365
        %464 = vmatprep.subr.mxu0 0.0
        %465 = vmatpush1.msra.mxu0 %v366
        %466 = vmatprep.subr.mxu0 0.0
        %467 = vmatpush1.msra.mxu0 %v367
        %468 = vmatprep.subr.mxu0 0.0
        %469 = vmatpush1.msra.mxu0 %v368
        %470 = vmatprep.subr.mxu0 0.0
        %471 = vmatpush1.msra.mxu0 %v369
        %472 = vmatprep.subr.mxu0 0.0
        %473 = vmatpush1.msra.mxu0 %v370
        %474 = vmatprep.mubr.f32.mxu0 %v276
        %475 = vmatmul.mubr.f32.gmra.mrb[0].mxu0 %v275
        %v476 = vpop.f32.mrb[0].mxu0
        %v477 = vadd.f32 %v408, %v476
        %v478 = vpop.f32.mrb[0].mxu0
        %479 = vmatprep.mubr.f32.mxu0 %v280
        %480 = vmatmul.mubr.f32.gmra.mrb[0].mxu0 %v279
        %v481 = vpop.f32.mrb[0].mxu0
        %v482 = vadd.f32 %v408, %v481
        %v483 = vpop.f32.mrb[0].mxu0
        %484 = vmatprep.mubr.f32.mxu0 %v284
        %485 = vmatmul.mubr.f32.gmra.mrb[0].mxu0 %v283
        %v486 = vpop.f32.mrb[0].mxu0
        %v487 = vadd.f32 %v408, %v486
        %v488 = vpop.f32.mrb[0].mxu0
        %489 = vmatprep.mubr.f32.mxu0 %v288
        %490 = vmatmul.mubr.f32.gmra.mrb[0].mxu0 %v287
        %v491 = vpop.f32.mrb[0].mxu0
        %v492 = vadd.f32 %v408, %v491
        %v493 = vpop.f32.mrb[0].mxu0
        %494 = vmatprep.mubr.f32.mxu0 %v292
        %495 = vmatmul.mubr.f32.gmra.mrb[0].mxu0 %v291
        %v496 = vpop.f32.mrb[0].mxu0
        %v497 = vadd.f32 %v408, %v496
        %v498 = vpop.f32.mrb[0].mxu0
        %499 = vmatprep.mubr.f32.mxu0 %v296
        %500 = vmatmul.mubr.f32.gmra.mrb[0].mxu0 %v295
        %v501 = vpop.f32.mrb[0].mxu0
        %v502 = vadd.f32 %v408, %v501
        %v503 = vpop.f32.mrb[0].mxu0
        %504 = vmatprep.mubr.f32.mxu0 %v300
        %505 = vmatmul.mubr.f32.gmra.mrb[0].mxu0 %v299
        %v506 = vpop.f32.mrb[0].mxu0
        %v507 = vadd.f32 %v408, %v506
        %v508 = vpop.f32.mrb[0].mxu0
        %509 = vmatprep.mubr.f32.mxu0 %v304
        %510 = vmatmul.mubr.f32.gmra.mrb[0].mxu0 %v303
        %v511 = vpop.f32.mrb[0].mxu0
        %v512 = vadd.f32 %v408, %v511
        %v513 = vpop.f32.mrb[0].mxu0
        %514 = vmatprep.mubr.f32.mxu0 %v308
        %515 = vmatmul.mubr.f32.gmra.mrb[0].mxu0 %v307
        %v516 = vpop.f32.mrb[0].mxu0
        %v517 = vadd.f32 %v408, %v516
        %v518 = vpop.f32.mrb[0].mxu0
        %519 = vmatprep.mubr.f32.mxu0 %v312
        %520 = vmatmul.mubr.f32.gmra.mrb[0].mxu0 %v311
        %v521 = vpop.f32.mrb[0].mxu0
        %v522 = vadd.f32 %v408, %v521
        %v523 = vpop.f32.mrb[0].mxu0
        %524 = vmatprep.mubr.f32.mxu0 %v316
        %525 = vmatmul.mubr.f32.gmra.mrb[0].mxu0 %v315
        %v526 = vpop.f32.mrb[0].mxu0
        %v527 = vadd.f32 %v408, %v526
        %v528 = vpop.f32.mrb[0].mxu0
        %529 = vmatprep.mubr.f32.mxu0 %v320
        %530 = vmatmul.mubr.f32.gmra.mrb[0].mxu0 %v319
        %v531 = vpop.f32.mrb[0].mxu0
        %v532 = vadd.f32 %v408, %v531
        %v533 = vpop.f32.mrb[0].mxu0
        %534 = vmatprep.mubr.f32.mxu0 %v324
        %535 = vmatmul.mubr.f32.gmra.mrb[0].mxu0 %v323
        %v536 = vpop.f32.mrb[0].mxu0
        %v537 = vadd.f32 %v408, %v536
        %v538 = vpop.f32.mrb[0].mxu0
        %539 = vmatprep.mubr.f32.mxu0 %v328
        %540 = vmatmul.mubr.f32.gmra.mrb[0].mxu0 %v327
        %v541 = vpop.f32.mrb[0].mxu0
        %v542 = vadd.f32 %v408, %v541
        %v543 = vpop.f32.mrb[0].mxu0
        %544 = vmatprep.mubr.f32.mxu0 %v332
        %545 = vmatmul.mubr.f32.gmra.mrb[0].mxu0 %v331
        %v546 = vpop.f32.mrb[0].mxu0
        %v547 = vadd.f32 %v408, %v546
        %v548 = vpop.f32.mrb[0].mxu0
        %549 = vmatprep.mubr.f32.mxu0 %v336
        %550 = vmatmul.mubr.f32.gmra.mrb[0].mxu0 %v335
        %v551 = vpop.f32.mrb[0].mxu0
        %v552 = vadd.f32 %v408, %v551
        %v553 = vpop.f32.mrb[0].mxu0
        %554 = vdwg.mxu0
        %555 = vmatprep.subr.mxu0 0.0
        %556 = vmatpush1.msra.mxu0 %v371
        %557 = vmatprep.subr.mxu0 0.0
        %558 = vmatpush1.msra.mxu0 %v372
        %559 = vmatprep.subr.mxu0 0.0
        %560 = vmatpush1.msra.mxu0 %v373
        %561 = vmatprep.subr.mxu0 0.0
        %562 = vmatpush1.msra.mxu0 %v374
        %563 = vmatprep.subr.mxu0 0.0
        %564 = vmatpush1.msra.mxu0 %v375
        %565 = vmatprep.subr.mxu0 0.0
        %566 = vmatpush1.msra.mxu0 %v376
        %567 = vmatprep.subr.mxu0 0.0
        %568 = vmatpush1.msra.mxu0 %v377
        %569 = vmatprep.subr.mxu0 0.0
        %570 = vmatpush1.msra.mxu0 %v378
        %571 = vmatprep.subr.mxu0 0.0
        %572 = vmatpush1.msra.mxu0 %v379
        %573 = vmatprep.subr.mxu0 0.0
        %574 = vmatpush1.msra.mxu0 %v380
        %575 = vmatprep.subr.mxu0 0.0
        %576 = vmatpush1.msra.mxu0 %v381
        %577 = vmatprep.subr.mxu0 0.0
        %578 = vmatpush1.msra.mxu0 %v382
        %579 = vmatprep.subr.mxu0 0.0
        %580 = vmatpush1.msra.mxu0 %v383
        %581 = vmatprep.subr.mxu0 0.0
        %582 = vmatpush1.msra.mxu0 %v384
        %583 = vmatprep.subr.mxu0 0.0
        %584 = vmatpush1.msra.mxu0 %v385
        %585 = vmatprep.subr.mxu0 0.0
        %586 = vmatpush1.msra.mxu0 %v386
        %587 = vmatprep.subr.mxu0 0.0
        %588 = vmatpush1.msra.mxu0 %v387
        %589 = vmatprep.subr.mxu0 0.0
        %590 = vmatpush1.msra.mxu0 %v388
        %591 = vmatprep.subr.mxu0 0.0
        %592 = vmatpush1.msra.mxu0 %v389
        %593 = vmatprep.subr.mxu0 0.0
        %594 = vmatpush1.msra.mxu0 %v390
        %595 = vmatprep.subr.mxu0 0.0
        %596 = vmatpush1.msra.mxu0 %v391
        %597 = vmatprep.subr.mxu0 0.0
        %598 = vmatpush1.msra.mxu0 %v392
        %599 = vmatprep.subr.mxu0 0.0
        %600 = vmatpush1.msra.mxu0 %v393
        %601 = vmatprep.subr.mxu0 0.0
        %602 = vmatpush1.msra.mxu0 %v394
        %603 = vmatprep.subr.mxu0 0.0
        %604 = vmatpush1.msra.mxu0 %v395
        %605 = vmatprep.subr.mxu0 0.0
        %606 = vmatpush1.msra.mxu0 %v396
        %607 = vmatprep.subr.mxu0 0.0
        %608 = vmatpush1.msra.mxu0 %v397
        %609 = vmatprep.subr.mxu0 0.0
        %610 = vmatpush1.msra.mxu0 %v398
        %611 = vmatprep.subr.mxu0 0.0
        %612 = vmatpush1.msra.mxu0 %v399
        %613 = vmatprep.subr.mxu0 0.0
        %614 = vmatpush1.msra.mxu0 %v400
        %615 = vmatprep.subr.mxu0 0.0
        %616 = vmatpush1.msra.mxu0 %v401
        %617 = vmatprep.subr.mxu0 0.0
        %618 = vmatpush1.msra.mxu0 %v402
        %619 = vmatprep.mubr.f32.mxu0 %v278
        %620 = vmatmul.mubr.f32.gmra.mrb[0].mxu0 %v277
        %v621 = vpop.f32.mrb[0].mxu0
        %v622 = vadd.f32 %v477, %v621
        %v623 = vpop.f32.mrb[0].mxu0
        %624 = vmatprep.mubr.f32.mxu0 %v282
        %625 = vmatmul.mubr.f32.gmra.mrb[0].mxu0 %v281
        %v626 = vpop.f32.mrb[0].mxu0
        %v627 = vadd.f32 %v482, %v626
        %v628 = vpop.f32.mrb[0].mxu0
        %629 = vmatprep.mubr.f32.mxu0 %v286
        %630 = vmatmul.mubr.f32.gmra.mrb[0].mxu0 %v285
        %v631 = vpop.f32.mrb[0].mxu0
        %v632 = vadd.f32 %v487, %v631
        %v633 = vpop.f32.mrb[0].mxu0
        %634 = vmatprep.mubr.f32.mxu0 %v290
        %635 = vmatmul.mubr.f32.gmra.mrb[0].mxu0 %v289
        %v636 = vpop.f32.mrb[0].mxu0
        %v637 = vadd.f32 %v492, %v636
        %v638 = vpop.f32.mrb[0].mxu0
        %639 = vmatprep.mubr.f32.mxu0 %v294
        %640 = vmatmul.mubr.f32.gmra.mrb[0].mxu0 %v293
        %v641 = vpop.f32.mrb[0].mxu0
        %v642 = vadd.f32 %v497, %v641
        %v643 = vpop.f32.mrb[0].mxu0
        %644 = vmatprep.mubr.f32.mxu0 %v298
        %645 = vmatmul.mubr.f32.gmra.mrb[0].mxu0 %v297
        %v646 = vpop.f32.mrb[0].mxu0
        %v647 = vadd.f32 %v502, %v646
        %v648 = vpop.f32.mrb[0].mxu0
        %649 = vmatprep.mubr.f32.mxu0 %v302
        %650 = vmatmul.mubr.f32.gmra.mrb[0].mxu0 %v301
        %v651 = vpop.f32.mrb[0].mxu0
        %v652 = vadd.f32 %v507, %v651
        %v653 = vpop.f32.mrb[0].mxu0
        %654 = vmatprep.mubr.f32.mxu0 %v306
        %655 = vmatmul.mubr.f32.gmra.mrb[0].mxu0 %v305
        %v656 = vpop.f32.mrb[0].mxu0
        %v657 = vadd.f32 %v512, %v656
        %v658 = vpop.f32.mrb[0].mxu0
        %659 = vmatprep.mubr.f32.mxu0 %v310
        %660 = vmatmul.mubr.f32.gmra.mrb[0].mxu0 %v309
        %v661 = vpop.f32.mrb[0].mxu0
        %v662 = vadd.f32 %v517, %v661
        %v663 = vpop.f32.mrb[0].mxu0
        %664 = vmatprep.mubr.f32.mxu0 %v314
        %665 = vmatmul.mubr.f32.gmra.mrb[0].mxu0 %v313
        %v666 = vpop.f32.mrb[0].mxu0
        %v667 = vadd.f32 %v522, %v666
        %v668 = vpop.f32.mrb[0].mxu0
        %669 = vmatprep.mubr.f32.mxu0 %v318
        %670 = vmatmul.mubr.f32.gmra.mrb[0].mxu0 %v317
        %v671 = vpop.f32.mrb[0].mxu0
        %v672 = vadd.f32 %v527, %v671
        %v673 = vpop.f32.mrb[0].mxu0
        %674 = vmatprep.mubr.f32.mxu0 %v322
        %675 = vmatmul.mubr.f32.gmra.mrb[0].mxu0 %v321
        %v676 = vpop.f32.mrb[0].mxu0
        %v677 = vadd.f32 %v532, %v676
        %v678 = vpop.f32.mrb[0].mxu0
        %679 = vmatprep.mubr.f32.mxu0 %v326
        %680 = vmatmul.mubr.f32.gmra.mrb[0].mxu0 %v325
        %v681 = vpop.f32.mrb[0].mxu0
        %v682 = vadd.f32 %v537, %v681
        %v683 = vpop.f32.mrb[0].mxu0
        %684 = vmatprep.mubr.f32.mxu0 %v330
        %685 = vmatmul.mubr.f32.gmra.mrb[0].mxu0 %v329
        %v686 = vpop.f32.mrb[0].mxu0
        %v687 = vadd.f32 %v542, %v686
        %v688 = vpop.f32.mrb[0].mxu0
        %689 = vmatprep.mubr.f32.mxu0 %v334
        %690 = vmatmul.mubr.f32.gmra.mrb[0].mxu0 %v333
        %v691 = vpop.f32.mrb[0].mxu0
        %v692 = vadd.f32 %v547, %v691
        %v693 = vpop.f32.mrb[0].mxu0
        %694 = vmatprep.mubr.f32.mxu0 %v338
        %695 = vmatmul.mubr.f32.gmra.mrb[0].mxu0 %v337
        %v696 = vpop.f32.mrb[0].mxu0
        %v697 = vadd.f32 %v552, %v696
        %v698 = vpop.f32.mrb[0].mxu0
        %699 = vdwg.mxu0
        %v700 = vmax.f32 %v622, 0.0
        %v701 = vmax.f32 %v627, 0.0
        %v702 = vmax.f32 %v632, 0.0
        %v703 = vmax.f32 %v637, 0.0
        %v704 = vmax.f32 %v642, 0.0
        %v705 = vmax.f32 %v647, 0.0
        %v706 = vmax.f32 %v652, 0.0
        %v707 = vmax.f32 %v657, 0.0
        %v708 = vmax.f32 %v662, 0.0
        %v709 = vmax.f32 %v667, 0.0
        %v710 = vmax.f32 %v672, 0.0
        %v711 = vmax.f32 %v677, 0.0
        %v712 = vmax.f32 %v682, 0.0
        %v713 = vmax.f32 %v687, 0.0
        %v714 = vmax.f32 %v692, 0.0
        %v715 = vmax.f32 %v697, 0.0
        %v716 = vld [vmem:[#allocation7] sm:$0xff]
        %v717 = vld [vmem:[#allocation7 + $0x8] sm:$0xff]
        %v718 = vld [vmem:[#allocation7 + $0x10] sm:$0xff]
        %v719 = vld [vmem:[#allocation7 + $0x18] sm:$0xff]
        %v720 = vld [vmem:[#allocation7 + $0x20] sm:$0xff]
        %v721 = vld [vmem:[#allocation7 + $0x28] sm:$0xff]
        %v722 = vld [vmem:[#allocation7 + $0x30] sm:$0xff]
        %v723 = vld [vmem:[#allocation7 + $0x38] sm:$0xff]
        %v724 = vld [vmem:[#allocation7 + $0x40] sm:$0xff]
        %v725 = vld [vmem:[#allocation7 + $0x48] sm:$0xff]
        %v726 = vld [vmem:[#allocation7 + $0x50] sm:$0xff]
        %v727 = vld [vmem:[#allocation7 + $0x58] sm:$0xff]
        %v728 = vld [vmem:[#allocation7 + $0x60] sm:$0xff]
        %v729 = vld [vmem:[#allocation7 + $0x68] sm:$0xff]
        %v730 = vld [vmem:[#allocation7 + $0x70] sm:$0xff]
        %v731 = vld [vmem:[#allocation7 + $0x78] sm:$0xff]
        %v732 = vld [vmem:[#allocation7 + $0x80] sm:$0xff]
        %v733 = vld [vmem:[#allocation7 + $0x88] sm:$0xff]
        %v734 = vld [vmem:[#allocation7 + $0x90] sm:$0xff]
        %v735 = vld [vmem:[#allocation7 + $0x98] sm:$0xff]
        %v736 = vld [vmem:[#allocation7 + $0xa0] sm:$0xff]
        %v737 = vld [vmem:[#allocation7 + $0xa8] sm:$0xff]
        %v738 = vld [vmem:[#allocation7 + $0xb0] sm:$0xff]
        %v739 = vld [vmem:[#allocation7 + $0xb8] sm:$0xff]
        %v740 = vld [vmem:[#allocation7 + $0xc0] sm:$0xff]
        %v741 = vld [vmem:[#allocation7 + $0xc8] sm:$0xff]
        %v742 = vld [vmem:[#allocation7 + $0xd0] sm:$0xff]
        %v743 = vld [vmem:[#allocation7 + $0xd8] sm:$0xff]
        %v744 = vld [vmem:[#allocation7 + $0xe0] sm:$0xff]
        %v745 = vld [vmem:[#allocation7 + $0xe8] sm:$0xff]
        %v746 = vld [vmem:[#allocation7 + $0xf0] sm:$0xff]
        %v747 = vld [vmem:[#allocation7 + $0xf8] sm:$0xff]
        %v748 = vld [vmem:[#allocation7 + $0x100] sm:$0xff]
        %v749 = vld [vmem:[#allocation7 + $0x108] sm:$0xff]
        %v750 = vld [vmem:[#allocation7 + $0x110] sm:$0xff]
        %v751 = vld [vmem:[#allocation7 + $0x118] sm:$0xff]
        %v752 = vld [vmem:[#allocation7 + $0x120] sm:$0xff]
        %v753 = vld [vmem:[#allocation7 + $0x128] sm:$0xff]
        %v754 = vld [vmem:[#allocation7 + $0x130] sm:$0xff]
        %v755 = vld [vmem:[#allocation7 + $0x138] sm:$0xff]
        %v756 = vld [vmem:[#allocation7 + $0x140] sm:$0xff]
        %v757 = vld [vmem:[#allocation7 + $0x148] sm:$0xff]
        %v758 = vld [vmem:[#allocation7 + $0x150] sm:$0xff]
        %v759 = vld [vmem:[#allocation7 + $0x158] sm:$0xff]
        %v760 = vld [vmem:[#allocation7 + $0x160] sm:$0xff]
        %v761 = vld [vmem:[#allocation7 + $0x168] sm:$0xff]
        %v762 = vld [vmem:[#allocation7 + $0x170] sm:$0xff]
        %v763 = vld [vmem:[#allocation7 + $0x178] sm:$0xff]
        %v764 = vld [vmem:[#allocation7 + $0x180] sm:$0xff]
        %v765 = vld [vmem:[#allocation7 + $0x188] sm:$0xff]
        %v766 = vld [vmem:[#allocation7 + $0x190] sm:$0xff]
        %v767 = vld [vmem:[#allocation7 + $0x198] sm:$0xff]
        %v768 = vld [vmem:[#allocation7 + $0x1a0] sm:$0xff]
        %v769 = vld [vmem:[#allocation7 + $0x1a8] sm:$0xff]
        %v770 = vld [vmem:[#allocation7 + $0x1b0] sm:$0xff]
        %v771 = vld [vmem:[#allocation7 + $0x1b8] sm:$0xff]
        %v772 = vld [vmem:[#allocation7 + $0x1c0] sm:$0xff]
        %v773 = vld [vmem:[#allocation7 + $0x1c8] sm:$0xff]
        %v774 = vld [vmem:[#allocation7 + $0x1d0] sm:$0xff]
        %v775 = vld [vmem:[#allocation7 + $0x1d8] sm:$0xff]
        %v776 = vld [vmem:[#allocation7 + $0x1e0] sm:$0xff]
        %v777 = vld [vmem:[#allocation7 + $0x1e8] sm:$0xff]
        %v778 = vld [vmem:[#allocation7 + $0x1f0] sm:$0xff]
        %v779 = vld [vmem:[#allocation7 + $0x1f8] sm:$0xff]
        %v780 = vld [vmem:[%s4] sm:$0xf]
        %v782 = vlaneseq
        %v783 = vshrl.u32 %v782, 7
        %v784 = vsub.s32 0, %v783
        %v785 = vrot.slane %v780, %v784
        %v786 = vlaneseq
        %v787 = vshrl.u32 %v786, 7
        %v788 = vsub.s32 1, %v787
        %v789 = vrot.slane %v780, %v788
        %v790 = vlaneseq
        %v791 = vshrl.u32 %v790, 7
        %v792 = vsub.s32 2, %v791
        %v793 = vrot.slane %v780, %v792
        %v794 = vlaneseq
        %v795 = vshrl.u32 %v794, 7
        %v796 = vsub.s32 3, %v795
        %v797 = vrot.slane %v780, %v796
        %802 = vmatprep.subr.mxu0 %v717
        %803 = vmatpush1.msra.mxu0 %v716
        %804 = vmatprep.subr.mxu0 %v721
        %805 = vmatpush1.msra.mxu0 %v720
        %806 = vmatprep.subr.mxu0 %v725
        %807 = vmatpush1.msra.mxu0 %v724
        %808 = vmatprep.subr.mxu0 %v729
        %809 = vmatpush1.msra.mxu0 %v728
        %810 = vmatprep.subr.mxu0 %v733
        %811 = vmatpush1.msra.mxu0 %v732
        %812 = vmatprep.subr.mxu0 %v737
        %813 = vmatpush1.msra.mxu0 %v736
        %814 = vmatprep.subr.mxu0 %v741
        %815 = vmatpush1.msra.mxu0 %v740
        %816 = vmatprep.subr.mxu0 %v745
        %817 = vmatpush1.msra.mxu0 %v744
        %818 = vmatprep.subr.mxu0 %v749
        %819 = vmatpush1.msra.mxu0 %v748
        %820 = vmatprep.subr.mxu0 %v753
        %821 = vmatpush1.msra.mxu0 %v752
        %822 = vmatprep.subr.mxu0 %v757
        %823 = vmatpush1.msra.mxu0 %v756
        %824 = vmatprep.subr.mxu0 %v761
        %825 = vmatpush1.msra.mxu0 %v760
        %826 = vmatprep.subr.mxu0 %v765
        %827 = vmatpush1.msra.mxu0 %v764
        %828 = vmatprep.subr.mxu0 %v769
        %829 = vmatpush1.msra.mxu0 %v768
        %830 = vmatprep.subr.mxu0 %v773
        %831 = vmatpush1.msra.mxu0 %v772
        %832 = vmatprep.subr.mxu0 %v777
        %833 = vmatpush1.msra.mxu0 %v776
        %834 = vmatprep.subr.mxu0 0.0
        %835 = vmatpush1.msra.mxu0 0.0
        %836 = vmatprep.subr.mxu0 0.0
        %837 = vmatpush1.msra.mxu0 0.0
        %838 = vmatprep.subr.mxu0 0.0
        %839 = vmatpush1.msra.mxu0 0.0
        %840 = vmatprep.subr.mxu0 0.0
        %841 = vmatpush1.msra.mxu0 0.0
        %842 = vmatprep.subr.mxu0 0.0
        %843 = vmatpush1.msra.mxu0 0.0
        %844 = vmatprep.subr.mxu0 0.0
        %845 = vmatpush1.msra.mxu0 0.0
        %846 = vmatprep.subr.mxu0 0.0
        %847 = vmatpush1.msra.mxu0 0.0
        %848 = vmatprep.subr.mxu0 0.0
        %849 = vmatpush1.msra.mxu0 0.0
        %850 = vmatprep.subr.mxu0 0.0
        %851 = vmatpush1.msra.mxu0 0.0
        %852 = vmatprep.subr.mxu0 0.0
        %853 = vmatpush1.msra.mxu0 0.0
        %854 = vmatprep.subr.mxu0 0.0
        %855 = vmatpush1.msra.mxu0 0.0
        %856 = vmatprep.subr.mxu0 0.0
        %857 = vmatpush1.msra.mxu0 0.0
        %858 = vmatprep.subr.mxu0 0.0
        %859 = vmatpush1.msra.mxu0 0.0
        %860 = vmatprep.subr.mxu0 0.0
        %861 = vmatpush1.msra.mxu0 0.0
        %862 = vmatprep.subr.mxu0 0.0
        %863 = vmatpush1.msra.mxu0 0.0
        %864 = vmatprep.subr.mxu0 0.0
        %865 = vmatpush1.msra.mxu0 0.0
        %866 = vmatprep.mubr.f32.mxu0 0.0
        %867 = vmatmul.mubr.f32.gmra.mrb[0].mxu0 %v700
        %v868 = vpop.f32.mrb[0].mxu0
        %v869 = vadd.f32 %v785, %v868
        %v870 = vpop.f32.mrb[0].mxu0
        %v871 = vadd.f32 %v789, %v870
        %872 = vmatprep.mubr.f32.mxu0 0.0
        %873 = vmatmul.mubr.f32.gmra.mrb[0].mxu0 %v701
        %v874 = vpop.f32.mrb[0].mxu0
        %v875 = vadd.f32 %v785, %v874
        %v876 = vpop.f32.mrb[0].mxu0
        %v877 = vadd.f32 %v789, %v876
        %878 = vmatprep.mubr.f32.mxu0 0.0
        %879 = vmatmul.mubr.f32.gmra.mrb[0].mxu0 %v702
        %v880 = vpop.f32.mrb[0].mxu0
        %v881 = vadd.f32 %v785, %v880
        %v882 = vpop.f32.mrb[0].mxu0
        %v883 = vadd.f32 %v789, %v882
        %884 = vmatprep.mubr.f32.mxu0 0.0
        %885 = vmatmul.mubr.f32.gmra.mrb[0].mxu0 %v703
        %v886 = vpop.f32.mrb[0].mxu0
        %v887 = vadd.f32 %v785, %v886
        %v888 = vpop.f32.mrb[0].mxu0
        %v889 = vadd.f32 %v789, %v888
        %890 = vmatprep.mubr.f32.mxu0 0.0
        %891 = vmatmul.mubr.f32.gmra.mrb[0].mxu0 %v704
        %v892 = vpop.f32.mrb[0].mxu0
        %v893 = vadd.f32 %v785, %v892
        %v894 = vpop.f32.mrb[0].mxu0
        %v895 = vadd.f32 %v789, %v894
        %896 = vmatprep.mubr.f32.mxu0 0.0
        %897 = vmatmul.mubr.f32.gmra.mrb[0].mxu0 %v705
        %v898 = vpop.f32.mrb[0].mxu0
        %v899 = vadd.f32 %v785, %v898
        %v900 = vpop.f32.mrb[0].mxu0
        %v901 = vadd.f32 %v789, %v900
        %902 = vmatprep.mubr.f32.mxu0 0.0
        %903 = vmatmul.mubr.f32.gmra.mrb[0].mxu0 %v706
        %v904 = vpop.f32.mrb[0].mxu0
        %v905 = vadd.f32 %v785, %v904
        %v906 = vpop.f32.mrb[0].mxu0
        %v907 = vadd.f32 %v789, %v906
        %908 = vmatprep.mubr.f32.mxu0 0.0
        %909 = vmatmul.mubr.f32.gmra.mrb[0].mxu0 %v707
        %v910 = vpop.f32.mrb[0].mxu0
        %v911 = vadd.f32 %v785, %v910
        %v912 = vpop.f32.mrb[0].mxu0
        %v913 = vadd.f32 %v789, %v912
        %914 = vmatprep.mubr.f32.mxu0 0.0
        %915 = vmatmul.mubr.f32.gmra.mrb[0].mxu0 %v708
        %v916 = vpop.f32.mrb[0].mxu0
        %v917 = vadd.f32 %v785, %v916
        %v918 = vpop.f32.mrb[0].mxu0
        %v919 = vadd.f32 %v789, %v918
        %920 = vmatprep.mubr.f32.mxu0 0.0
        %921 = vmatmul.mubr.f32.gmra.mrb[0].mxu0 %v709
        %v922 = vpop.f32.mrb[0].mxu0
        %v923 = vadd.f32 %v785, %v922
        %v924 = vpop.f32.mrb[0].mxu0
        %v925 = vadd.f32 %v789, %v924
        %926 = vmatprep.mubr.f32.mxu0 0.0
        %927 = vmatmul.mubr.f32.gmra.mrb[0].mxu0 %v710
        %v928 = vpop.f32.mrb[0].mxu0
        %v929 = vadd.f32 %v785, %v928
        %v930 = vpop.f32.mrb[0].mxu0
        %v931 = vadd.f32 %v789, %v930
        %932 = vmatprep.mubr.f32.mxu0 0.0
        %933 = vmatmul.mubr.f32.gmra.mrb[0].mxu0 %v711
        %v934 = vpop.f32.mrb[0].mxu0
        %v935 = vadd.f32 %v785, %v934
        %v936 = vpop.f32.mrb[0].mxu0
        %v937 = vadd.f32 %v789, %v936
        %938 = vmatprep.mubr.f32.mxu0 0.0
        %939 = vmatmul.mubr.f32.gmra.mrb[0].mxu0 %v712
        %v940 = vpop.f32.mrb[0].mxu0
        %v941 = vadd.f32 %v785, %v940
        %v942 = vpop.f32.mrb[0].mxu0
        %v943 = vadd.f32 %v789, %v942
        %944 = vmatprep.mubr.f32.mxu0 0.0
        %945 = vmatmul.mubr.f32.gmra.mrb[0].mxu0 %v713
        %v946 = vpop.f32.mrb[0].mxu0
        %v947 = vadd.f32 %v785, %v946
        %v948 = vpop.f32.mrb[0].mxu0
        %v949 = vadd.f32 %v789, %v948
        %950 = vmatprep.mubr.f32.mxu0 0.0
        %951 = vmatmul.mubr.f32.gmra.mrb[0].mxu0 %v714
        %v952 = vpop.f32.mrb[0].mxu0
        %v953 = vadd.f32 %v785, %v952
        %v954 = vpop.f32.mrb[0].mxu0
        %v955 = vadd.f32 %v789, %v954
        %956 = vmatprep.mubr.f32.mxu0 0.0
        %957 = vmatmul.mubr.f32.gmra.mrb[0].mxu0 %v715
        %v958 = vpop.f32.mrb[0].mxu0
        %v959 = vadd.f32 %v785, %v958
        %v960 = vpop.f32.mrb[0].mxu0
        %v961 = vadd.f32 %v789, %v960
        %962 = vdwg.mxu0
        %963 = vmatprep.subr.mxu0 %v719
        %964 = vmatpush1.msra.mxu0 %v718
        %965 = vmatprep.subr.mxu0 %v723
        %966 = vmatpush1.msra.mxu0 %v722
        %967 = vmatprep.subr.mxu0 %v727
        %968 = vmatpush1.msra.mxu0 %v726
        %969 = vmatprep.subr.mxu0 %v731
        %970 = vmatpush1.msra.mxu0 %v730
        %971 = vmatprep.subr.mxu0 %v735
        %972 = vmatpush1.msra.mxu0 %v734
        %973 = vmatprep.subr.mxu0 %v739
        %974 = vmatpush1.msra.mxu0 %v738
        %975 = vmatprep.subr.mxu0 %v743
        %976 = vmatpush1.msra.mxu0 %v742
        %977 = vmatprep.subr.mxu0 %v747
        %978 = vmatpush1.msra.mxu0 %v746
        %979 = vmatprep.subr.mxu0 %v751
        %980 = vmatpush1.msra.mxu0 %v750
        %981 = vmatprep.subr.mxu0 %v755
        %982 = vmatpush1.msra.mxu0 %v754
        %983 = vmatprep.subr.mxu0 %v759
        %984 = vmatpush1.msra.mxu0 %v758
        %985 = vmatprep.subr.mxu0 %v763
        %986 = vmatpush1.msra.mxu0 %v762
        %987 = vmatprep.subr.mxu0 %v767
        %988 = vmatpush1.msra.mxu0 %v766
        %989 = vmatprep.subr.mxu0 %v771
        %990 = vmatpush1.msra.mxu0 %v770
        %991 = vmatprep.subr.mxu0 %v775
        %992 = vmatpush1.msra.mxu0 %v774
        %993 = vmatprep.subr.mxu0 %v779
        %994 = vmatpush1.msra.mxu0 %v778
        %995 = vmatprep.subr.mxu0 0.0
        %996 = vmatpush1.msra.mxu0 0.0
        %997 = vmatprep.subr.mxu0 0.0
        %998 = vmatpush1.msra.mxu0 0.0
        %999 = vmatprep.subr.mxu0 0.0
        %1000 = vmatpush1.msra.mxu0 0.0
        %1001 = vmatprep.subr.mxu0 0.0
        %1002 = vmatpush1.msra.mxu0 0.0
        %1003 = vmatprep.subr.mxu0 0.0
        %1004 = vmatpush1.msra.mxu0 0.0
        %1005 = vmatprep.subr.mxu0 0.0
        %1006 = vmatpush1.msra.mxu0 0.0
        %1007 = vmatprep.subr.mxu0 0.0
        %1008 = vmatpush1.msra.mxu0 0.0
        %1009 = vmatprep.subr.mxu0 0.0
        %1010 = vmatpush1.msra.mxu0 0.0
        %1011 = vmatprep.subr.mxu0 0.0
        %1012 = vmatpush1.msra.mxu0 0.0
        %1013 = vmatprep.subr.mxu0 0.0
        %1014 = vmatpush1.msra.mxu0 0.0
        %1015 = vmatprep.subr.mxu0 0.0
        %1016 = vmatpush1.msra.mxu0 0.0
        %1017 = vmatprep.subr.mxu0 0.0
        %1018 = vmatpush1.msra.mxu0 0.0
        %1019 = vmatprep.subr.mxu0 0.0
        %1020 = vmatpush1.msra.mxu0 0.0
        %1021 = vmatprep.subr.mxu0 0.0
        %1022 = vmatpush1.msra.mxu0 0.0
        %1023 = vmatprep.subr.mxu0 0.0
        %1024 = vmatpush1.msra.mxu0 0.0
        %1025 = vmatprep.subr.mxu0 0.0
        %1026 = vmatpush1.msra.mxu0 0.0
        %1027 = vmatprep.mubr.f32.mxu0 0.0
        %1028 = vmatmul.mubr.f32.gmra.mrb[0].mxu0 %v700
        %v1029 = vpop.f32.mrb[0].mxu0
        %v1030 = vadd.f32 %v793, %v1029
        %v1031 = vpop.f32.mrb[0].mxu0
        %v1032 = vadd.f32 %v797, %v1031
        %1033 = vmatprep.mubr.f32.mxu0 0.0
        %1034 = vmatmul.mubr.f32.gmra.mrb[0].mxu0 %v701
        %v1035 = vpop.f32.mrb[0].mxu0
        %v1036 = vadd.f32 %v793, %v1035
        %v1037 = vpop.f32.mrb[0].mxu0
        %v1038 = vadd.f32 %v797, %v1037
        %1039 = vmatprep.mubr.f32.mxu0 0.0
        %1040 = vmatmul.mubr.f32.gmra.mrb[0].mxu0 %v702
        %v1041 = vpop.f32.mrb[0].mxu0
        %v1042 = vadd.f32 %v793, %v1041
        %v1043 = vpop.f32.mrb[0].mxu0
        %v1044 = vadd.f32 %v797, %v1043
        %1045 = vmatprep.mubr.f32.mxu0 0.0
        %1046 = vmatmul.mubr.f32.gmra.mrb[0].mxu0 %v703
        %v1047 = vpop.f32.mrb[0].mxu0
        %v1048 = vadd.f32 %v793, %v1047
        %v1049 = vpop.f32.mrb[0].mxu0
        %v1050 = vadd.f32 %v797, %v1049
        %1051 = vmatprep.mubr.f32.mxu0 0.0
        %1052 = vmatmul.mubr.f32.gmra.mrb[0].mxu0 %v704
        %v1053 = vpop.f32.mrb[0].mxu0
        %v1054 = vadd.f32 %v793, %v1053
        %v1055 = vpop.f32.mrb[0].mxu0
        %v1056 = vadd.f32 %v797, %v1055
        %1057 = vmatprep.mubr.f32.mxu0 0.0
        %1058 = vmatmul.mubr.f32.gmra.mrb[0].mxu0 %v705
        %v1059 = vpop.f32.mrb[0].mxu0
        %v1060 = vadd.f32 %v793, %v1059
        %v1061 = vpop.f32.mrb[0].mxu0
        %v1062 = vadd.f32 %v797, %v1061
        %1063 = vmatprep.mubr.f32.mxu0 0.0
        %1064 = vmatmul.mubr.f32.gmra.mrb[0].mxu0 %v706
        %v1065 = vpop.f32.mrb[0].mxu0
        %v1066 = vadd.f32 %v793, %v1065
        %v1067 = vpop.f32.mrb[0].mxu0
        %v1068 = vadd.f32 %v797, %v1067
        %1069 = vmatprep.mubr.f32.mxu0 0.0
        %1070 = vmatmul.mubr.f32.gmra.mrb[0].mxu0 %v707
        %v1071 = vpop.f32.mrb[0].mxu0
        %v1072 = vadd.f32 %v793, %v1071
        %v1073 = vpop.f32.mrb[0].mxu0
        %v1074 = vadd.f32 %v797, %v1073
        %1075 = vmatprep.mubr.f32.mxu0 0.0
        %1076 = vmatmul.mubr.f32.gmra.mrb[0].mxu0 %v708
        %v1077 = vpop.f32.mrb[0].mxu0
        %v1078 = vadd.f32 %v793, %v1077
        %v1079 = vpop.f32.mrb[0].mxu0
        %v1080 = vadd.f32 %v797, %v1079
        %1081 = vmatprep.mubr.f32.mxu0 0.0
        %1082 = vmatmul.mubr.f32.gmra.mrb[0].mxu0 %v709
        %v1083 = vpop.f32.mrb[0].mxu0
        %v1084 = vadd.f32 %v793, %v1083
        %v1085 = vpop.f32.mrb[0].mxu0
        %v1086 = vadd.f32 %v797, %v1085
        %1087 = vmatprep.mubr.f32.mxu0 0.0
        %1088 = vmatmul.mubr.f32.gmra.mrb[0].mxu0 %v710
        %v1089 = vpop.f32.mrb[0].mxu0
        %v1090 = vadd.f32 %v793, %v1089
        %v1091 = vpop.f32.mrb[0].mxu0
        %v1092 = vadd.f32 %v797, %v1091
        %1093 = vmatprep.mubr.f32.mxu0 0.0
        %1094 = vmatmul.mubr.f32.gmra.mrb[0].mxu0 %v711
        %v1095 = vpop.f32.mrb[0].mxu0
        %v1096 = vadd.f32 %v793, %v1095
        %v1097 = vpop.f32.mrb[0].mxu0
        %v1098 = vadd.f32 %v797, %v1097
        %1099 = vmatprep.mubr.f32.mxu0 0.0
        %1100 = vmatmul.mubr.f32.gmra.mrb[0].mxu0 %v712
        %v1101 = vpop.f32.mrb[0].mxu0
        %v1102 = vadd.f32 %v793, %v1101
        %v1103 = vpop.f32.mrb[0].mxu0
        %v1104 = vadd.f32 %v797, %v1103
        %1105 = vmatprep.mubr.f32.mxu0 0.0
        %1106 = vmatmul.mubr.f32.gmra.mrb[0].mxu0 %v713
        %v1107 = vpop.f32.mrb[0].mxu0
        %v1108 = vadd.f32 %v793, %v1107
        %v1109 = vpop.f32.mrb[0].mxu0
        %v1110 = vadd.f32 %v797, %v1109
        %1111 = vmatprep.mubr.f32.mxu0 0.0
        %1112 = vmatmul.mubr.f32.gmra.mrb[0].mxu0 %v714
        %v1113 = vpop.f32.mrb[0].mxu0
        %v1114 = vadd.f32 %v793, %v1113
        %v1115 = vpop.f32.mrb[0].mxu0
        %v1116 = vadd.f32 %v797, %v1115
        %1117 = vmatprep.mubr.f32.mxu0 0.0
        %1118 = vmatmul.mubr.f32.gmra.mrb[0].mxu0 %v715
        %v1119 = vpop.f32.mrb[0].mxu0
        %v1120 = vadd.f32 %v793, %v1119
        %v1121 = vpop.f32.mrb[0].mxu0
        %v1122 = vadd.f32 %v797, %v1121
        %1123 = vdwg.mxu0
        %v1124 = vadd.f32 %v275, %v869
        %v1125 = vadd.f32 %v276, %v871
        %v1126 = vadd.f32 %v277, %v1030
        %v1127 = vadd.f32 %v278, %v1032
        %v1128 = vadd.f32 %v279, %v875
        %v1129 = vadd.f32 %v280, %v877
        %v1130 = vadd.f32 %v281, %v1036
        %v1131 = vadd.f32 %v282, %v1038
        %v1132 = vadd.f32 %v283, %v881
        %v1133 = vadd.f32 %v284, %v883
        %v1134 = vadd.f32 %v285, %v1042
        %v1135 = vadd.f32 %v286, %v1044
        %v1136 = vadd.f32 %v287, %v887
        %v1137 = vadd.f32 %v288, %v889
        %v1138 = vadd.f32 %v289, %v1048
        %v1139 = vadd.f32 %v290, %v1050
        %v1140 = vadd.f32 %v291, %v893
        %v1141 = vadd.f32 %v292, %v895
        %v1142 = vadd.f32 %v293, %v1054
        %v1143 = vadd.f32 %v294, %v1056
        %v1144 = vadd.f32 %v295, %v899
        %v1145 = vadd.f32 %v296, %v901
        %v1146 = vadd.f32 %v297, %v1060
        %v1147 = vadd.f32 %v298, %v1062
        %v1148 = vadd.f32 %v299, %v905
        %v1149 = vadd.f32 %v300, %v907
        %v1150 = vadd.f32 %v301, %v1066
        %v1151 = vadd.f32 %v302, %v1068
        %v1152 = vadd.f32 %v303, %v911
        %v1153 = vadd.f32 %v304, %v913
        %v1154 = vadd.f32 %v305, %v1072
        %v1155 = vadd.f32 %v306, %v1074
        %v1156 = vadd.f32 %v307, %v917
        %v1157 = vadd.f32 %v308, %v919
        %v1158 = vadd.f32 %v309, %v1078
        %v1159 = vadd.f32 %v310, %v1080
        %v1160 = vadd.f32 %v311, %v923
        %v1161 = vadd.f32 %v312, %v925
        %v1162 = vadd.f32 %v313, %v1084
        %v1163 = vadd.f32 %v314, %v1086
        %v1164 = vadd.f32 %v315, %v929
        %v1165 = vadd.f32 %v316, %v931
        %v1166 = vadd.f32 %v317, %v1090
        %v1167 = vadd.f32 %v318, %v1092
        %v1168 = vadd.f32 %v319, %v935
        %v1169 = vadd.f32 %v320, %v937
        %v1170 = vadd.f32 %v321, %v1096
        %v1171 = vadd.f32 %v322, %v1098
        %v1172 = vadd.f32 %v323, %v941
        %v1173 = vadd.f32 %v324, %v943
        %v1174 = vadd.f32 %v325, %v1102
        %v1175 = vadd.f32 %v326, %v1104
        %v1176 = vadd.f32 %v327, %v947
        %v1177 = vadd.f32 %v328, %v949
        %v1178 = vadd.f32 %v329, %v1108
        %v1179 = vadd.f32 %v330, %v1110
        %v1180 = vadd.f32 %v331, %v953
        %v1181 = vadd.f32 %v332, %v955
        %v1182 = vadd.f32 %v333, %v1114
        %v1183 = vadd.f32 %v334, %v1116
        %v1184 = vadd.f32 %v335, %v959
        %v1185 = vadd.f32 %v336, %v961
        %v1186 = vadd.f32 %v337, %v1120
        %v1187 = vadd.f32 %v338, %v1122
        %1188 = vst [vmem:[%s272] sm:$0xff] %v1124
        %1189 = vst [vmem:[%s272 + $0x8] sm:$0xff] %v1125
        %1190 = vst [vmem:[%s272 + $0x10] sm:$0xff] %v1126
        %1191 = vst [vmem:[%s272 + $0x18] sm:$0xff] %v1127
        %1192 = vst [vmem:[%s272 + $0x20] sm:$0xff] %v1128
        %1193 = vst [vmem:[%s272 + $0x28] sm:$0xff] %v1129
        %1194 = vst [vmem:[%s272 + $0x30] sm:$0xff] %v1130
        %1195 = vst [vmem:[%s272 + $0x38] sm:$0xff] %v1131
        %1196 = vst [vmem:[%s272 + $0x40] sm:$0xff] %v1132
        %1197 = vst [vmem:[%s272 + $0x48] sm:$0xff] %v1133
        %1198 = vst [vmem:[%s272 + $0x50] sm:$0xff] %v1134
        %1199 = vst [vmem:[%s272 + $0x58] sm:$0xff] %v1135
        %1200 = vst [vmem:[%s272 + $0x60] sm:$0xff] %v1136
        %1201 = vst [vmem:[%s272 + $0x68] sm:$0xff] %v1137
        %1202 = vst [vmem:[%s272 + $0x70] sm:$0xff] %v1138
        %1203 = vst [vmem:[%s272 + $0x78] sm:$0xff] %v1139
        %1204 = vst [vmem:[%s272 + $0x80] sm:$0xff] %v1140
        %1205 = vst [vmem:[%s272 + $0x88] sm:$0xff] %v1141
        %1206 = vst [vmem:[%s272 + $0x90] sm:$0xff] %v1142
        %1207 = vst [vmem:[%s272 + $0x98] sm:$0xff] %v1143
        %1208 = vst [vmem:[%s272 + $0xa0] sm:$0xff] %v1144
        %1209 = vst [vmem:[%s272 + $0xa8] sm:$0xff] %v1145
        %1210 = vst [vmem:[%s272 + $0xb0] sm:$0xff] %v1146
        %1211 = vst [vmem:[%s272 + $0xb8] sm:$0xff] %v1147
        %1212 = vst [vmem:[%s272 + $0xc0] sm:$0xff] %v1148
        %1213 = vst [vmem:[%s272 + $0xc8] sm:$0xff] %v1149
        %1214 = vst [vmem:[%s272 + $0xd0] sm:$0xff] %v1150
        %1215 = vst [vmem:[%s272 + $0xd8] sm:$0xff] %v1151
        %1216 = vst [vmem:[%s272 + $0xe0] sm:$0xff] %v1152
        %1217 = vst [vmem:[%s272 + $0xe8] sm:$0xff] %v1153
        %1218 = vst [vmem:[%s272 + $0xf0] sm:$0xff] %v1154
        %1219 = vst [vmem:[%s272 + $0xf8] sm:$0xff] %v1155
        %1220 = vst [vmem:[%s272 + $0x100] sm:$0xff] %v1156
        %1221 = vst [vmem:[%s272 + $0x108] sm:$0xff] %v1157
        %1222 = vst [vmem:[%s272 + $0x110] sm:$0xff] %v1158
        %1223 = vst [vmem:[%s272 + $0x118] sm:$0xff] %v1159
        %1224 = vst [vmem:[%s272 + $0x120] sm:$0xff] %v1160
        %1225 = vst [vmem:[%s272 + $0x128] sm:$0xff] %v1161
        %1226 = vst [vmem:[%s272 + $0x130] sm:$0xff] %v1162
        %1227 = vst [vmem:[%s272 + $0x138] sm:$0xff] %v1163
        %1228 = vst [vmem:[%s272 + $0x140] sm:$0xff] %v1164
        %1229 = vst [vmem:[%s272 + $0x148] sm:$0xff] %v1165
        %1230 = vst [vmem:[%s272 + $0x150] sm:$0xff] %v1166
        %1231 = vst [vmem:[%s272 + $0x158] sm:$0xff] %v1167
        %1232 = vst [vmem:[%s272 + $0x160] sm:$0xff] %v1168
        %1233 = vst [vmem:[%s272 + $0x168] sm:$0xff] %v1169
        %1234 = vst [vmem:[%s272 + $0x170] sm:$0xff] %v1170
        %1235 = vst [vmem:[%s272 + $0x178] sm:$0xff] %v1171
        %1236 = vst [vmem:[%s272 + $0x180] sm:$0xff] %v1172
        %1237 = vst [vmem:[%s272 + $0x188] sm:$0xff] %v1173
        %1238 = vst [vmem:[%s272 + $0x190] sm:$0xff] %v1174
        %1239 = vst [vmem:[%s272 + $0x198] sm:$0xff] %v1175
        %1240 = vst [vmem:[%s272 + $0x1a0] sm:$0xff] %v1176
        %1241 = vst [vmem:[%s272 + $0x1a8] sm:$0xff] %v1177
        %1242 = vst [vmem:[%s272 + $0x1b0] sm:$0xff] %v1178
        %1243 = vst [vmem:[%s272 + $0x1b8] sm:$0xff] %v1179
        %1244 = vst [vmem:[%s272 + $0x1c0] sm:$0xff] %v1180
        %1245 = vst [vmem:[%s272 + $0x1c8] sm:$0xff] %v1181
        %1246 = vst [vmem:[%s272 + $0x1d0] sm:$0xff] %v1182
        %1247 = vst [vmem:[%s272 + $0x1d8] sm:$0xff] %v1183
        %1248 = vst [vmem:[%s272 + $0x1e0] sm:$0xff] %v1184
        %1249 = vst [vmem:[%s272 + $0x1e8] sm:$0xff] %v1185
        %1250 = vst [vmem:[%s272 + $0x1f0] sm:$0xff] %v1186
        %1251 = vst [vmem:[%s272 + $0x1f8] sm:$0xff] %v1187
        %s1252 = sand.u32 %s141, 1
        %s1253 = scalar_lea.sflag [#allocation4], %s1252
        %s1254 = sand.u32 %s141, 1
        %s1255 = smul.addr %s1254, 512
        %s1256 = scalar_lea.vmem [#allocation8], %s1255
        // Predicated region
        $region53: #{tpu_custom_call.1} parent=39 // pred_check
          %p1257 = pneg %p151
        $region54: #{tpu_custom_call.1} parent=39 // pred_check_branch
          %1259 = sbr.rel (%p1257) target = $region56
        $region55: #{tpu_custom_call.1} parent=39 // pred_region
          %s1260 = smul.u32 16, %s23
          %s1262 = ssub.s32 8192, 8192
          %1263 = vsyncadd %s1253, %s1262
          %s1264 = smul.addr %s1260, 4
          %s1265 = smul.addr %s1264, 128
          %s1266 = scalar_lea.hbm %s5, %s1265
          %s1267 = sshll.u32 %s1256, 4
          %s1268 = int_to_ptr.vmem [resolvable:$true] %s1267
          %1273 = dma.vmem_to_hbm [thread:$0]  %s1268, 8192, %s1266, %s1253, 512, 512, 32
        $region56: #{tpu_custom_call.1} parent=39 // pred_fallthru
          _
      $region40: #{tpu_custom_call.1} parent=5 // pred_fallthru
        _
      %p1274 = scmp.le.s32.totalorder 2, %s18
      // Predicated region
      $region57: #{tpu_custom_call.1} parent=5 // pred_check
        %p1275 = pneg %p1274
      $region58: #{tpu_custom_call.1} parent=5 // pred_check_branch
        %1277 = sbr.rel (%p1275) target = $region60
      $region59: #{tpu_custom_call.1} parent=5 // pred_region
        %s1278 = ssub.s32 %s18, 2
        // Predicated region
        $region61: #{tpu_custom_call.1} parent=59 // pred_check
          %p1279 = pneg %p157
        $region62: #{tpu_custom_call.1} parent=59 // pred_check_branch
          %1281 = sbr.rel (%p1279) target = $region64
        $region63: #{tpu_custom_call.1} parent=59 // pred_region
          %s1282 = sand.u32 %s142, 1
          %s1283 = scalar_lea.sflag [#allocation4], %s1282
          %s1284 = sand.u32 %s142, 1
          %s1285 = smul.addr %s1284, 512
          %s1286 = scalar_lea.vmem [#allocation8], %s1285
          %1287 = dma.done %s1283, 8192
        $region64: #{tpu_custom_call.1} parent=59 // pred_fallthru
          _
      $region60: #{tpu_custom_call.1} parent=5 // pred_fallthru
        _
    $region6: #{tpu_custom_call.1} parent=1 // loop_footer
      %s22 = sadd.s32 1, %s18
    $region7: #{tpu_custom_call.1} parent=1 // loop_footer_branch
      %17 = sbr.rel target = $region3
    $region8: #{tpu_custom_call.1} parent=1 // loop_exit
      _
    %1288 = vsyncpa [#allocation3], 1
    %s1289 = scalar_lea.sflag [#allocation3], 1
    %1290 = vsyncpa %s1289, 1
    %1291 = vsyncpa [#allocation6], 1
    %1292 = vsyncpa [#allocation4], 1
    %s1293 = scalar_lea.sflag [#allocation4], 1
    %1294 = vsyncpa %s1293, 1

</llo_original>
